<compile_context>
chip_gen: v6e
topology: v6e:2x2x1
jax: 0.10.0
libtpu: 0.0.40
codegen_flags: <defaults>
</compile_context>

<pallas_src>
import jax
import jax.numpy as jnp
from jax.experimental import pallas as pl
from jax.experimental.pallas import tpu as pltpu


N_BRANCHES = 7  # real branches in the module


def _two_tensorcores_per_chip() -> bool:
    """True on chips with 2 TensorCores sharing a chip (v7x); False otherwise."""
    try:
        kind = jax.devices()[0].device_kind.lower()
    except Exception:  # pragma: no cover - no devices at import time
        return False
    return ("v7" in kind) or ("7x" in kind)


_SPLIT_BRANCHES = _two_tensorcores_per_chip()
# v7x: pad 7 -> 8 branches, 4 per grid step (grid=(2,)) so the 2 TCs split the DMA.
# v5e/v6e: single TC -> one grid step over all 7 branches, no padding slot.
N_SLOTS = 8 if _SPLIT_BRANCHES else N_BRANCHES
BRANCH_BLOCK = 4 if _SPLIT_BRANCHES else N_BRANCHES


def fc_relu_kernel(x_ref, w_ref, o_ref):
    # x_ref: [G, B, C] (f32), w_ref: [G, C, F] (bf16), o_ref: [G, B, F] (f32)
    x = x_ref[...].astype(w_ref.dtype)  # bf16 compute path; weights are the hot bytes
    y = jnp.einsum(
        "gbc,gcf->gbf", x, w_ref[...],
        preferred_element_type=jnp.float32,
    )
    o_ref[...] = jnp.maximum(y, 0.0).astype(o_ref.dtype)


def prepare_weight_stack(weights, weight_dtype=jnp.bfloat16):
    """Hoisted out of the forward path: call ONCE per parameter set.

    weights: list of 7 torch-layout arrays [F, C] for FC1..FC7.
    Returns a [N_SLOTS, C, F] stack (cast to `weight_dtype`) ordered to match the
    module's input/output list order [glo_drop, glo, g_par, p0, p1, c0, c1]:
      slot 0 -> FC5, 1 -> FC1, 2 -> FC2, 3 -> FC3, 4 -> FC4, 5 -> FC6, 6 -> FC7.
    On 2-TC chips an extra zero slot 7 is appended (its output is discarded).
    """
    w1, w2, w3, w4, w5, w6, w7 = weights
    ordered = [w5, w1, w2, w3, w4, w6, w7]
    w_stack = jnp.stack([w.T for w in ordered], axis=0)          # [7, C, F]
    pad = N_SLOTS - N_BRANCHES
    if pad:
        zeros = jnp.zeros((pad,) + w_stack.shape[1:], w_stack.dtype)
        w_stack = jnp.concatenate([w_stack, zeros], axis=0)      # [8, C, F]
    return w_stack.astype(weight_dtype)


@jax.jit
def lmbn_p_fc_forward_stacked(x_stack, w_stack):
    """Stacked entry point (no per-call stack/slice overhead).

    x_stack: [N_SLOTS, B, C] activations (f32), branch order
             [glo_drop, glo, g_par, p0, p1, c0, c1(, pad)].
    w_stack: [N_SLOTS, C, F] from prepare_weight_stack (transposed, bf16).
    Returns [N_SLOTS, B, F] float32.
    """
    G, B, C = x_stack.shape
    Gw, Cw, F_dim = w_stack.shape
    assert G == N_SLOTS and Gw == N_SLOTS and Cw == C

    x_bytes = jnp.dtype(x_stack.dtype).itemsize
    w_bytes = jnp.dtype(w_stack.dtype).itemsize
    o_bytes = jnp.dtype(jnp.float32).itemsize
    cost = pl.CostEstimate(
        flops=2 * G * B * C * F_dim,
        transcendentals=0,
        bytes_accessed=G * (B * C * x_bytes + C * F_dim * w_bytes
                            + B * F_dim * o_bytes),
    )

    return pl.pallas_call(
        fc_relu_kernel,
        out_shape=jax.ShapeDtypeStruct((G, B, F_dim), jnp.float32),
        grid=(G // BRANCH_BLOCK,),
        in_specs=[
            pl.BlockSpec((BRANCH_BLOCK, B, C), lambda i: (i, 0, 0)),
            pl.BlockSpec((BRANCH_BLOCK, C, F_dim), lambda i: (i, 0, 0)),
        ],
        out_specs=pl.BlockSpec((BRANCH_BLOCK, B, F_dim), lambda i: (i, 0, 0)),
        compiler_params=pltpu.CompilerParams(
            # On v7x the 2 grid steps are independent -> shard across the 2 TCs.
            # On single-TC chips there is only 1 step, semantics are irrelevant.
            dimension_semantics=("parallel",) if _SPLIT_BRANCHES else ("arbitrary",),
        ),
        cost_estimate=cost,
    )(x_stack, w_stack)


def lmbn_p_fc_forward(xs, w_stack):
    """Module-fidelity wrapper.

    xs: list of 7 arrays [B, C] in module order [glo_drop, glo, g_par, p0, p1, c0, c1].
    Returns list of 7 arrays [B, F] float32 in the same order.
    (If this sits in a hot serving loop, prefer lmbn_p_fc_forward_stacked and keep
    activations stacked as [7, B, C] in the surrounding model code.)
    """
    xs = list(xs)
    pad = N_SLOTS - N_BRANCHES
    if pad:
        xs = xs + [jnp.zeros_like(xs[0])] * pad
    x_stack = jnp.stack(xs, axis=0)                              # [N_SLOTS, B, C]
    out = lmbn_p_fc_forward_stacked(x_stack, w_stack)
    return [out[k] for k in range(N_BRANCHES)]


def make_params(key, channels, feats, n_layers=7):
    """Deterministic synthetic weights, shape [feats, channels] (torch Linear layout)."""
    bound = 1.0 / (channels ** 0.5)
    keys = jax.random.split(key, n_layers)
    return [
        jax.random.uniform(k, (feats, channels), jnp.float32, minval=-bound, maxval=bound)
        for k in keys
    ]


if __name__ == "__main__":
    # Module implies channels=512 (osnet_x1_0 default) and feats = args.feats.
    # Small-but-consistent shapes: batch=8, channels=512, feats=256.
    batch, channels, feats = 8, 512, 256

    key = jax.random.PRNGKey(0)
    k_w, k_x = jax.random.split(key)

    weights = make_params(k_w, channels, feats)      # FC1..FC7, torch [F, C]
    w_stack = prepare_weight_stack(weights)          # hoisted: once per param set, bf16

    x_keys = jax.random.split(k_x, 7)
    # Input order: [glo_drop, glo, g_par, p0, p1, c0, c1]
    xs = [jax.random.normal(k, (batch, channels), jnp.float32) for k in x_keys]

    outs = lmbn_p_fc_forward(xs, w_stack)
    outs = jax.block_until_ready(outs)

    glo_drop, glo, g_par, p0, p1, c0, c1 = xs
    w1, w2, w3, w4, w5, w6, w7 = weights
    pairs = [(glo_drop, w5), (glo, w1), (g_par, w2), (p0, w3), (p1, w4),
             (c0, w6), (c1, w7)]

    # Reference 1: same bf16 weight / bf16 activation path with f32 accumulation
    # (checks kernel correctness independent of quantization error).
    ref_bf16 = [
        jnp.maximum(
            jnp.dot(x.astype(jnp.bfloat16), w.T.astype(jnp.bfloat16),
                    preferred_element_type=jnp.float32),
            0.0)
        for x, w in pairs
    ]
    # Reference 2: full-f32 torch semantics relu(x @ W.T) (checks quantization is mild).
    ref_f32 = [jnp.maximum(x @ w.T, 0.0) for x, w in pairs]

    for o, rb, rf in zip(outs, ref_bf16, ref_f32):
        assert o.shape == (batch, feats)
        assert o.dtype == jnp.float32
        assert jnp.allclose(o, rb, atol=2e-3, rtol=2e-3)   # kernel vs bf16 reference
        assert jnp.allclose(o, rf, atol=5e-2, rtol=5e-2)   # bf16 quantization budget

    print("KERNEL_OK")
</pallas_src>

<mosaic_0001>
module attributes {stable_mosaic.version = 11 : i64} {
  func.func @fc_relu_kernel(%arg0: i32, %arg1: memref<7x8x512xf32, #tpu.memory_space<vmem>>, %arg2: memref<7x512x256xbf16, #tpu.memory_space<vmem>>, %arg3: memref<7x8x256xf32, #tpu.memory_space<vmem>>) attributes {dimension_semantics = [#tpu.dimension_semantics<arbitrary>], iteration_bounds = array<i64: 1>, scalar_prefetch = 0 : i64, scratch_operands = 0 : i64, tpu.core_type = #tpu.core_type<tc>, window_params = [{transform_indices = @transform_0, window_bounds = array<i64: 7, 8, 512>}, {transform_indices = @transform_1, window_bounds = array<i64: 7, 512, 256>}, {transform_indices = @transform_2, window_bounds = array<i64: 7, 8, 256>}]} {
    %c0 = arith.constant 0 : index
    %c0_0 = arith.constant 0 : index
    %c0_1 = arith.constant 0 : index
    %0 = vector.load %arg1[%c0, %c0_0, %c0_1] : memref<7x8x512xf32, #tpu.memory_space<vmem>>, vector<7x8x512xf32>
    %1 = arith.truncf %0 : vector<7x8x512xf32> to vector<7x8x512xbf16>
    %c0_2 = arith.constant 0 : index
    %c0_3 = arith.constant 0 : index
    %c0_4 = arith.constant 0 : index
    %2 = vector.load %arg2[%c0_2, %c0_3, %c0_4] : memref<7x512x256xbf16, #tpu.memory_space<vmem>>, vector<7x512x256xbf16>
    "tpu.trace_start"() <{level = 10 : i32, message = "gbc,gcf->gbf"}> : () -> ()
    %cst = arith.constant dense<0.000000e+00> : vector<7x8x256xf32>
    %3 = tpu.matmul %1, %2, %cst {dimension_numbers = #tpu.dot_dimension_numbers<[2], [1], [1], [2], [0, 0, 0, 1, 1, 2], [0], [0]>} : vector<7x8x512xbf16>, vector<7x512x256xbf16>, vector<7x8x256xf32> -> vector<7x8x256xf32>
    "tpu.trace_stop"() : () -> ()
    %cst_5 = arith.constant 0.000000e+00 : f32
    %4 = vector.broadcast %cst_5 : f32 to vector<7x8x256xf32>
    %5 = arith.maximumf %3, %4 : vector<7x8x256xf32>
    %c0_6 = arith.constant 0 : index
    %c0_7 = arith.constant 0 : index
    %c0_8 = arith.constant 0 : index
    %6 = vector.load %arg3[%c0_6, %c0_7, %c0_8] : memref<7x8x256xf32, #tpu.memory_space<vmem>>, vector<7x8x256xf32>
    tpu.vector_store %arg3[%c0_6, %c0_7, %c0_8], %5 {strides = array<i32>} : memref<7x8x256xf32, #tpu.memory_space<vmem>>, vector<7x8x256xf32>,
    return
  }
  func.func @transform_0(%arg0: i32) -> (i32, i32, i32) {
    %c0_i32 = arith.constant 0 : i32
    %c0_i32_0 = arith.constant 0 : i32
    %c0_i32_1 = arith.constant 0 : i32
    return %arg0, %c0_i32, %c0_i32_0 : i32, i32, i32
  }
  func.func @transform_1(%arg0: i32) -> (i32, i32, i32) {
    %c0_i32 = arith.constant 0 : i32
    %c0_i32_0 = arith.constant 0 : i32
    %c0_i32_1 = arith.constant 0 : i32
    return %arg0, %c0_i32, %c0_i32_0 : i32, i32, i32
  }
  func.func @transform_2(%arg0: i32) -> (i32, i32, i32) {
    %c0_i32 = arith.constant 0 : i32
    %c0_i32_0 = arith.constant 0 : i32
    %c0_i32_1 = arith.constant 0 : i32
    return %arg0, %c0_i32, %c0_i32_0 : i32, i32, i32
  }
}

</mosaic_0001>

<llo_original>
// kernel: lmbn_p_fc_forward_stacked.1
$region0: #{lmbn_p_fc_forward_stacked.1}
  #allocation0 [shape = 'u32[]', space=smem, size = 0x4, offset = 0x4, fixed_abs, tag = 'smem constant byte address 0x4 - core index']
  #allocation1 [shape = 'u32[144,128]{1,0:T(1,128)}', space=vmem, size = 0x12000, scoped, tag = 'internal scratch']
  %s0 = inlined_call_operand.hbm [shape: f32[7,8,512], index: 0, kind: input, shape index: {}]
  %s1 = inlined_call_operand.hbm [shape: bf16[7,512,256], index: 1, kind: input, shape index: {}]
  %s2 = inlined_call_operand.hbm [shape: f32[7,8,256], index: 2, kind: output, shape index: {}]
  %s3 = sld [smem:[#allocation0]]
  $region26: #{lmbn_p_fc_forward_stacked.1} parent=0
    _
  %s5 = ssub.s32 1, %s3
  %s6 = scalar_select 0, %s5, %s3
  $region1: #{lmbn_p_fc_forward_stacked.1} parent=0
    #allocation2 [shape = 'u8[114688]{0}', space=vmem, size = 0x1c000, scoped, tag = 'input window, operand 0, single buffered']
    #allocation3 [shape = 's32[1]{0}', space=sflag, size = 0x4, scoped, tag = 'scoped memory for lmbn_p_fc_forward_stacked.1']
    #allocation4 [shape = 's32[1]{0}', space=sflag, size = 0x4, scoped, tag = 'scoped memory for lmbn_p_fc_forward_stacked.1']
    #allocation5 [shape = 'u8[1835008]{0}', space=vmem, size = 0x1c0000, scoped, tag = 'input window, operand 1, single buffered']
    #allocation6 [shape = 's32[1]{0}', space=sflag, size = 0x4, scoped, tag = 'scoped memory for lmbn_p_fc_forward_stacked.1']
    #allocation7 [shape = 'u8[57344]{0}', space=vmem, size = 0xe000, scoped, tag = 'output window, operand 0, single buffered']
    %7 = vsyncpa [#allocation3], 0
    %8 = vsyncpa [#allocation6], 0
    %9 = vsyncpa [#allocation4], 0
    // Predicated region
    $region2: #{lmbn_p_fc_forward_stacked.1} parent=1 // pred_check
      _
    $region3: #{lmbn_p_fc_forward_stacked.1} parent=1 // pred_check_branch
      %11 = sbr.rel (0) target = $region5
    $region4: #{lmbn_p_fc_forward_stacked.1} parent=1 // pred_region
      %s13 = ssub.s32 3584, 3584
      %14 = vsyncadd [#allocation3], %s13
      %s15 = sshll.u32 [#allocation2], 4
      %s16 = int_to_ptr.vmem [resolvable:$true] %s15
      %21 = dma.hbm_to_vmem [thread:$0]  %s0, 3584, %s16, [#allocation3], 512, 512, 32
    $region5: #{lmbn_p_fc_forward_stacked.1} parent=1 // pred_fallthru
      _
    // Predicated region
    $region6: #{lmbn_p_fc_forward_stacked.1} parent=1 // pred_check
      _
    $region7: #{lmbn_p_fc_forward_stacked.1} parent=1 // pred_check_branch
      %23 = sbr.rel (0) target = $region9
    $region8: #{lmbn_p_fc_forward_stacked.1} parent=1 // pred_region
      %s25 = ssub.s32 57344, 57344
      %26 = vsyncadd [#allocation6], %s25
      %s27 = sshll.u32 [#allocation5], 4
      %s28 = int_to_ptr.vmem [resolvable:$true] %s27
      %33 = dma.hbm_to_vmem [thread:$0]  %s1, 57344, %s28, [#allocation6], 128, 128, 8
    $region9: #{lmbn_p_fc_forward_stacked.1} parent=1 // pred_fallthru
      _
    // Predicated region
    $region10: #{lmbn_p_fc_forward_stacked.1} parent=1 // pred_check
      _
    $region11: #{lmbn_p_fc_forward_stacked.1} parent=1 // pred_check_branch
      %35 = sbr.rel (0) target = $region13
    $region12: #{lmbn_p_fc_forward_stacked.1} parent=1 // pred_region
      %36 = dma.done [#allocation3], 3584
    $region13: #{lmbn_p_fc_forward_stacked.1} parent=1 // pred_fallthru
      _
    // Predicated region
    $region14: #{lmbn_p_fc_forward_stacked.1} parent=1 // pred_check
      _
    $region15: #{lmbn_p_fc_forward_stacked.1} parent=1 // pred_check_branch
      %38 = sbr.rel (0) target = $region17
    $region16: #{lmbn_p_fc_forward_stacked.1} parent=1 // pred_region
      %39 = dma.done [#allocation6], 57344
    $region17: #{lmbn_p_fc_forward_stacked.1} parent=1 // pred_fallthru
      _
    %v40 = vld [vmem:[#allocation2] sm:$0xff]
    %v41 = vld [vmem:[#allocation2 + $0x8] sm:$0xff]
    %v42 = vld [vmem:[#allocation2 + $0x10] sm:$0xff]
    %v43 = vld [vmem:[#allocation2 + $0x18] sm:$0xff]
    %v44 = vld [vmem:[#allocation2 + $0x20] sm:$0xff]
    %v45 = vld [vmem:[#allocation2 + $0x28] sm:$0xff]
    %v46 = vld [vmem:[#allocation2 + $0x30] sm:$0xff]
    %v47 = vld [vmem:[#allocation2 + $0x38] sm:$0xff]
    %v48 = vld [vmem:[#allocation2 + $0x40] sm:$0xff]
    %v49 = vld [vmem:[#allocation2 + $0x48] sm:$0xff]
    %v50 = vld [vmem:[#allocation2 + $0x50] sm:$0xff]
    %v51 = vld [vmem:[#allocation2 + $0x58] sm:$0xff]
    %v52 = vld [vmem:[#allocation2 + $0x60] sm:$0xff]
    %v53 = vld [vmem:[#allocation2 + $0x68] sm:$0xff]
    %v54 = vld [vmem:[#allocation2 + $0x70] sm:$0xff]
    %v55 = vld [vmem:[#allocation2 + $0x78] sm:$0xff]
    %v56 = vld [vmem:[#allocation2 + $0x80] sm:$0xff]
    %v57 = vld [vmem:[#allocation2 + $0x88] sm:$0xff]
    %v58 = vld [vmem:[#allocation2 + $0x90] sm:$0xff]
    %v59 = vld [vmem:[#allocation2 + $0x98] sm:$0xff]
    %v60 = vld [vmem:[#allocation2 + $0xa0] sm:$0xff]
    %v61 = vld [vmem:[#allocation2 + $0xa8] sm:$0xff]
    %v62 = vld [vmem:[#allocation2 + $0xb0] sm:$0xff]
    %v63 = vld [vmem:[#allocation2 + $0xb8] sm:$0xff]
    %v64 = vld [vmem:[#allocation2 + $0xc0] sm:$0xff]
    %v65 = vld [vmem:[#allocation2 + $0xc8] sm:$0xff]
    %v66 = vld [vmem:[#allocation2 + $0xd0] sm:$0xff]
    %v67 = vld [vmem:[#allocation2 + $0xd8] sm:$0xff]
    %v68 = vpack.c.bf16 %v40, %v40
    %v69 = vpack.c.bf16 %v41, %v41
    %v70 = vpack.c.bf16 %v42, %v42
    %v71 = vpack.c.bf16 %v43, %v43
    %v72 = vpack.c.bf16 %v44, %v44
    %v73 = vpack.c.bf16 %v45, %v45
    %v74 = vpack.c.bf16 %v46, %v46
    %v75 = vpack.c.bf16 %v47, %v47
    %v76 = vpack.c.bf16 %v48, %v48
    %v77 = vpack.c.bf16 %v49, %v49
    %v78 = vpack.c.bf16 %v50, %v50
    %v79 = vpack.c.bf16 %v51, %v51
    %v80 = vpack.c.bf16 %v52, %v52
    %v81 = vpack.c.bf16 %v53, %v53
    %v82 = vpack.c.bf16 %v54, %v54
    %v83 = vpack.c.bf16 %v55, %v55
    %v84 = vpack.c.bf16 %v56, %v56
    %v85 = vpack.c.bf16 %v57, %v57
    %v86 = vpack.c.bf16 %v58, %v58
    %v87 = vpack.c.bf16 %v59, %v59
    %v88 = vpack.c.bf16 %v60, %v60
    %v89 = vpack.c.bf16 %v61, %v61
    %v90 = vpack.c.bf16 %v62, %v62
    %v91 = vpack.c.bf16 %v63, %v63
    %v92 = vpack.c.bf16 %v64, %v64
    %v93 = vpack.c.bf16 %v65, %v65
    %v94 = vpack.c.bf16 %v66, %v66
    %v95 = vpack.c.bf16 %v67, %v67
    %v96 = vld [vmem:[#allocation5] sm:$0xff]
    %v97 = vld [vmem:[#allocation5 + $0x8] sm:$0xff]
    %v98 = vld [vmem:[#allocation5 + $0x10] sm:$0xff]
    %v99 = vld [vmem:[#allocation5 + $0x18] sm:$0xff]
    %v100 = vld [vmem:[#allocation5 + $0x20] sm:$0xff]
    %v101 = vld [vmem:[#allocation5 + $0x28] sm:$0xff]
    %v102 = vld [vmem:[#allocation5 + $0x30] sm:$0xff]
    %v103 = vld [vmem:[#allocation5 + $0x38] sm:$0xff]
    %v104 = vld [vmem:[#allocation5 + $0x40] sm:$0xff]
    %v105 = vld [vmem:[#allocation5 + $0x48] sm:$0xff]
    %v106 = vld [vmem:[#allocation5 + $0x50] sm:$0xff]
    %v107 = vld [vmem:[#allocation5 + $0x58] sm:$0xff]
    %v108 = vld [vmem:[#allocation5 + $0x60] sm:$0xff]
    %v109 = vld [vmem:[#allocation5 + $0x68] sm:$0xff]
    %v110 = vld [vmem:[#allocation5 + $0x70] sm:$0xff]
    %v111 = vld [vmem:[#allocation5 + $0x78] sm:$0xff]
    %v112 = vld [vmem:[#allocation5 + $0x80] sm:$0xff]
    %v113 = vld [vmem:[#allocation5 + $0x88] sm:$0xff]
    %v114 = vld [vmem:[#allocation5 + $0x90] sm:$0xff]
    %v115 = vld [vmem:[#allocation5 + $0x98] sm:$0xff]
    %v116 = vld [vmem:[#allocation5 + $0xa0] sm:$0xff]
    %v117 = vld [vmem:[#allocation5 + $0xa8] sm:$0xff]
    %v118 = vld [vmem:[#allocation5 + $0xb0] sm:$0xff]
    %v119 = vld [vmem:[#allocation5 + $0xb8] sm:$0xff]
    %v120 = vld [vmem:[#allocation5 + $0xc0] sm:$0xff]
    %v121 = vld [vmem:[#allocation5 + $0xc8] sm:$0xff]
    %v122 = vld [vmem:[#allocation5 + $0xd0] sm:$0xff]
    %v123 = vld [vmem:[#allocation5 + $0xd8] sm:$0xff]
    %v124 = vld [vmem:[#allocation5 + $0xe0] sm:$0xff]
    %v125 = vld [vmem:[#allocation5 + $0xe8] sm:$0xff]
    %v126 = vld [vmem:[#allocation5 + $0xf0] sm:$0xff]
    %v127 = vld [vmem:[#allocation5 + $0xf8] sm:$0xff]
    %v128 = vld [vmem:[#allocation5 + $0x100] sm:$0xff]
    %v129 = vld [vmem:[#allocation5 + $0x108] sm:$0xff]
    %v130 = vld [vmem:[#allocation5 + $0x110] sm:$0xff]
    %v131 = vld [vmem:[#allocation5 + $0x118] sm:$0xff]
    %v132 = vld [vmem:[#allocation5 + $0x120] sm:$0xff]
    %v133 = vld [vmem:[#allocation5 + $0x128] sm:$0xff]
    %v134 = vld [vmem:[#allocation5 + $0x130] sm:$0xff]
    %v135 = vld [vmem:[#allocation5 + $0x138] sm:$0xff]
    %v136 = vld [vmem:[#allocation5 + $0x140] sm:$0xff]
    %v137 = vld [vmem:[#allocation5 + $0x148] sm:$0xff]
    %v138 = vld [vmem:[#allocation5 + $0x150] sm:$0xff]
    %v139 = vld [vmem:[#allocation5 + $0x158] sm:$0xff]
    %v140 = vld [vmem:[#allocation5 + $0x160] sm:$0xff]
    %v141 = vld [vmem:[#allocation5 + $0x168] sm:$0xff]
    %v142 = vld [vmem:[#allocation5 + $0x170] sm:$0xff]
    %v143 = vld [vmem:[#allocation5 + $0x178] sm:$0xff]
    %v144 = vld [vmem:[#allocation5 + $0x180] sm:$0xff]
    %v145 = vld [vmem:[#allocation5 + $0x188] sm:$0xff]
    %v146 = vld [vmem:[#allocation5 + $0x190] sm:$0xff]
    %v147 = vld [vmem:[#allocation5 + $0x198] sm:$0xff]
    %v148 = vld [vmem:[#allocation5 + $0x1a0] sm:$0xff]
    %v149 = vld [vmem:[#allocation5 + $0x1a8] sm:$0xff]
    %v150 = vld [vmem:[#allocation5 + $0x1b0] sm:$0xff]
    %v151 = vld [vmem:[#allocation5 + $0x1b8] sm:$0xff]
    %v152 = vld [vmem:[#allocation5 + $0x1c0] sm:$0xff]
    %v153 = vld [vmem:[#allocation5 + $0x1c8] sm:$0xff]
    %v154 = vld [vmem:[#allocation5 + $0x1d0] sm:$0xff]
    %v155 = vld [vmem:[#allocation5 + $0x1d8] sm:$0xff]
    %v156 = vld [vmem:[#allocation5 + $0x1e0] sm:$0xff]
    %v157 = vld [vmem:[#allocation5 + $0x1e8] sm:$0xff]
    %v158 = vld [vmem:[#allocation5 + $0x1f0] sm:$0xff]
    %v159 = vld [vmem:[#allocation5 + $0x1f8] sm:$0xff]
    %v160 = vld [vmem:[#allocation5 + $0x200] sm:$0xff]
    %v161 = vld [vmem:[#allocation5 + $0x208] sm:$0xff]
    %v162 = vld [vmem:[#allocation5 + $0x210] sm:$0xff]
    %v163 = vld [vmem:[#allocation5 + $0x218] sm:$0xff]
    %v164 = vld [vmem:[#allocation5 + $0x220] sm:$0xff]
    %v165 = vld [vmem:[#allocation5 + $0x228] sm:$0xff]
    %v166 = vld [vmem:[#allocation5 + $0x230] sm:$0xff]
    %v167 = vld [vmem:[#allocation5 + $0x238] sm:$0xff]
    %v168 = vld [vmem:[#allocation5 + $0x240] sm:$0xff]
    %v169 = vld [vmem:[#allocation5 + $0x248] sm:$0xff]
    %v170 = vld [vmem:[#allocation5 + $0x250] sm:$0xff]
    %v171 = vld [vmem:[#allocation5 + $0x258] sm:$0xff]
    %v172 = vld [vmem:[#allocation5 + $0x260] sm:$0xff]
    %v173 = vld [vmem:[#allocation5 + $0x268] sm:$0xff]
    %v174 = vld [vmem:[#allocation5 + $0x270] sm:$0xff]
    %v175 = vld [vmem:[#allocation5 + $0x278] sm:$0xff]
    %v176 = vld [vmem:[#allocation5 + $0x280] sm:$0xff]
    %v177 = vld [vmem:[#allocation5 + $0x288] sm:$0xff]
    %v178 = vld [vmem:[#allocation5 + $0x290] sm:$0xff]
    %v179 = vld [vmem:[#allocation5 + $0x298] sm:$0xff]
    %v180 = vld [vmem:[#allocation5 + $0x2a0] sm:$0xff]
    %v181 = vld [vmem:[#allocation5 + $0x2a8] sm:$0xff]
    %v182 = vld [vmem:[#allocation5 + $0x2b0] sm:$0xff]
    %v183 = vld [vmem:[#allocation5 + $0x2b8] sm:$0xff]
    %v184 = vld [vmem:[#allocation5 + $0x2c0] sm:$0xff]
    %v185 = vld [vmem:[#allocation5 + $0x2c8] sm:$0xff]
    %v186 = vld [vmem:[#allocation5 + $0x2d0] sm:$0xff]
    %v187 = vld [vmem:[#allocation5 + $0x2d8] sm:$0xff]
    %v188 = vld [vmem:[#allocation5 + $0x2e0] sm:$0xff]
    %v189 = vld [vmem:[#allocation5 + $0x2e8] sm:$0xff]
    %v190 = vld [vmem:[#allocation5 + $0x2f0] sm:$0xff]
    %v191 = vld [vmem:[#allocation5 + $0x2f8] sm:$0xff]
    %v192 = vld [vmem:[#allocation5 + $0x300] sm:$0xff]
    %v193 = vld [vmem:[#allocation5 + $0x308] sm:$0xff]
    %v194 = vld [vmem:[#allocation5 + $0x310] sm:$0xff]
    %v195 = vld [vmem:[#allocation5 + $0x318] sm:$0xff]
    %v196 = vld [vmem:[#allocation5 + $0x320] sm:$0xff]
    %v197 = vld [vmem:[#allocation5 + $0x328] sm:$0xff]
    %v198 = vld [vmem:[#allocation5 + $0x330] sm:$0xff]
    %v199 = vld [vmem:[#allocation5 + $0x338] sm:$0xff]
    %v200 = vld [vmem:[#allocation5 + $0x340] sm:$0xff]
    %v201 = vld [vmem:[#allocation5 + $0x348] sm:$0xff]
    %v202 = vld [vmem:[#allocation5 + $0x350] sm:$0xff]
    %v203 = vld [vmem:[#allocation5 + $0x358] sm:$0xff]
    %v204 = vld [vmem:[#allocation5 + $0x360] sm:$0xff]
    %v205 = vld [vmem:[#allocation5 + $0x368] sm:$0xff]
    %v206 = vld [vmem:[#allocation5 + $0x370] sm:$0xff]
    %v207 = vld [vmem:[#allocation5 + $0x378] sm:$0xff]
    %v208 = vld [vmem:[#allocation5 + $0x380] sm:$0xff]
    %v209 = vld [vmem:[#allocation5 + $0x388] sm:$0xff]
    %v210 = vld [vmem:[#allocation5 + $0x390] sm:$0xff]
    %v211 = vld [vmem:[#allocation5 + $0x398] sm:$0xff]
    %v212 = vld [vmem:[#allocation5 + $0x3a0] sm:$0xff]
    %v213 = vld [vmem:[#allocation5 + $0x3a8] sm:$0xff]
    %v214 = vld [vmem:[#allocation5 + $0x3b0] sm:$0xff]
    %v215 = vld [vmem:[#allocation5 + $0x3b8] sm:$0xff]
    %v216 = vld [vmem:[#allocation5 + $0x3c0] sm:$0xff]
    %v217 = vld [vmem:[#allocation5 + $0x3c8] sm:$0xff]
    %v218 = vld [vmem:[#allocation5 + $0x3d0] sm:$0xff]
    %v219 = vld [vmem:[#allocation5 + $0x3d8] sm:$0xff]
    %v220 = vld [vmem:[#allocation5 + $0x3e0] sm:$0xff]
    %v221 = vld [vmem:[#allocation5 + $0x3e8] sm:$0xff]
    %v222 = vld [vmem:[#allocation5 + $0x3f0] sm:$0xff]
    %v223 = vld [vmem:[#allocation5 + $0x3f8] sm:$0xff]
    %v224 = vld [vmem:[#allocation5 + $0x400] sm:$0xff]
    %v225 = vld [vmem:[#allocation5 + $0x408] sm:$0xff]
    %v226 = vld [vmem:[#allocation5 + $0x410] sm:$0xff]
    %v227 = vld [vmem:[#allocation5 + $0x418] sm:$0xff]
    %v228 = vld [vmem:[#allocation5 + $0x420] sm:$0xff]
    %v229 = vld [vmem:[#allocation5 + $0x428] sm:$0xff]
    %v230 = vld [vmem:[#allocation5 + $0x430] sm:$0xff]
    %v231 = vld [vmem:[#allocation5 + $0x438] sm:$0xff]
    %v232 = vld [vmem:[#allocation5 + $0x440] sm:$0xff]
    %v233 = vld [vmem:[#allocation5 + $0x448] sm:$0xff]
    %v234 = vld [vmem:[#allocation5 + $0x450] sm:$0xff]
    %v235 = vld [vmem:[#allocation5 + $0x458] sm:$0xff]
    %v236 = vld [vmem:[#allocation5 + $0x460] sm:$0xff]
    %v237 = vld [vmem:[#allocation5 + $0x468] sm:$0xff]
    %v238 = vld [vmem:[#allocation5 + $0x470] sm:$0xff]
    %v239 = vld [vmem:[#allocation5 + $0x478] sm:$0xff]
    %v240 = vld [vmem:[#allocation5 + $0x480] sm:$0xff]
    %v241 = vld [vmem:[#allocation5 + $0x488] sm:$0xff]
    %v242 = vld [vmem:[#allocation5 + $0x490] sm:$0xff]
    %v243 = vld [vmem:[#allocation5 + $0x498] sm:$0xff]
    %v244 = vld [vmem:[#allocation5 + $0x4a0] sm:$0xff]
    %v245 = vld [vmem:[#allocation5 + $0x4a8] sm:$0xff]
    %v246 = vld [vmem:[#allocation5 + $0x4b0] sm:$0xff]
    %v247 = vld [vmem:[#allocation5 + $0x4b8] sm:$0xff]
    %v248 = vld [vmem:[#allocation5 + $0x4c0] sm:$0xff]
    %v249 = vld [vmem:[#allocation5 + $0x4c8] sm:$0xff]
    %v250 = vld [vmem:[#allocation5 + $0x4d0] sm:$0xff]
    %v251 = vld [vmem:[#allocation5 + $0x4d8] sm:$0xff]
    %v252 = vld [vmem:[#allocation5 + $0x4e0] sm:$0xff]
    %v253 = vld [vmem:[#allocation5 + $0x4e8] sm:$0xff]
    %v254 = vld [vmem:[#allocation5 + $0x4f0] sm:$0xff]
    %v255 = vld [vmem:[#allocation5 + $0x4f8] sm:$0xff]
    %v256 = vld [vmem:[#allocation5 + $0x500] sm:$0xff]
    %v257 = vld [vmem:[#allocation5 + $0x508] sm:$0xff]
    %v258 = vld [vmem:[#allocation5 + $0x510] sm:$0xff]
    %v259 = vld [vmem:[#allocation5 + $0x518] sm:$0xff]
    %v260 = vld [vmem:[#allocation5 + $0x520] sm:$0xff]
    %v261 = vld [vmem:[#allocation5 + $0x528] sm:$0xff]
    %v262 = vld [vmem:[#allocation5 + $0x530] sm:$0xff]
    %v263 = vld [vmem:[#allocation5 + $0x538] sm:$0xff]
    %v264 = vld [vmem:[#allocation5 + $0x540] sm:$0xff]
    %v265 = vld [vmem:[#allocation5 + $0x548] sm:$0xff]
    %v266 = vld [vmem:[#allocation5 + $0x550] sm:$0xff]
    %v267 = vld [vmem:[#allocation5 + $0x558] sm:$0xff]
    %v268 = vld [vmem:[#allocation5 + $0x560] sm:$0xff]
    %v269 = vld [vmem:[#allocation5 + $0x568] sm:$0xff]
    %v270 = vld [vmem:[#allocation5 + $0x570] sm:$0xff]
    %v271 = vld [vmem:[#allocation5 + $0x578] sm:$0xff]
    %v272 = vld [vmem:[#allocation5 + $0x580] sm:$0xff]
    %v273 = vld [vmem:[#allocation5 + $0x588] sm:$0xff]
    %v274 = vld [vmem:[#allocation5 + $0x590] sm:$0xff]
    %v275 = vld [vmem:[#allocation5 + $0x598] sm:$0xff]
    %v276 = vld [vmem:[#allocation5 + $0x5a0] sm:$0xff]
    %v277 = vld [vmem:[#allocation5 + $0x5a8] sm:$0xff]
    %v278 = vld [vmem:[#allocation5 + $0x5b0] sm:$0xff]
    %v279 = vld [vmem:[#allocation5 + $0x5b8] sm:$0xff]
    %v280 = vld [vmem:[#allocation5 + $0x5c0] sm:$0xff]
    %v281 = vld [vmem:[#allocation5 + $0x5c8] sm:$0xff]
    %v282 = vld [vmem:[#allocation5 + $0x5d0] sm:$0xff]
    %v283 = vld [vmem:[#allocation5 + $0x5d8] sm:$0xff]
    %v284 = vld [vmem:[#allocation5 + $0x5e0] sm:$0xff]
    %v285 = vld [vmem:[#allocation5 + $0x5e8] sm:$0xff]
    %v286 = vld [vmem:[#allocation5 + $0x5f0] sm:$0xff]
    %v287 = vld [vmem:[#allocation5 + $0x5f8] sm:$0xff]
    %v288 = vld [vmem:[#allocation5 + $0x600] sm:$0xff]
    %v289 = vld [vmem:[#allocation5 + $0x608] sm:$0xff]
    %v290 = vld [vmem:[#allocation5 + $0x610] sm:$0xff]
    %v291 = vld [vmem:[#allocation5 + $0x618] sm:$0xff]
    %v292 = vld [vmem:[#allocation5 + $0x620] sm:$0xff]
    %v293 = vld [vmem:[#allocation5 + $0x628] sm:$0xff]
    %v294 = vld [vmem:[#allocation5 + $0x630] sm:$0xff]
    %v295 = vld [vmem:[#allocation5 + $0x638] sm:$0xff]
    %v296 = vld [vmem:[#allocation5 + $0x640] sm:$0xff]
    %v297 = vld [vmem:[#allocation5 + $0x648] sm:$0xff]
    %v298 = vld [vmem:[#allocation5 + $0x650] sm:$0xff]
    %v299 = vld [vmem:[#allocation5 + $0x658] sm:$0xff]
    %v300 = vld [vmem:[#allocation5 + $0x660] sm:$0xff]
    %v301 = vld [vmem:[#allocation5 + $0x668] sm:$0xff]
    %v302 = vld [vmem:[#allocation5 + $0x670] sm:$0xff]
    %v303 = vld [vmem:[#allocation5 + $0x678] sm:$0xff]
    %v304 = vld [vmem:[#allocation5 + $0x680] sm:$0xff]
    %v305 = vld [vmem:[#allocation5 + $0x688] sm:$0xff]
    %v306 = vld [vmem:[#allocation5 + $0x690] sm:$0xff]
    %v307 = vld [vmem:[#allocation5 + $0x698] sm:$0xff]
    %v308 = vld [vmem:[#allocation5 + $0x6a0] sm:$0xff]
    %v309 = vld [vmem:[#allocation5 + $0x6a8] sm:$0xff]
    %v310 = vld [vmem:[#allocation5 + $0x6b0] sm:$0xff]
    %v311 = vld [vmem:[#allocation5 + $0x6b8] sm:$0xff]
    %v312 = vld [vmem:[#allocation5 + $0x6c0] sm:$0xff]
    %v313 = vld [vmem:[#allocation5 + $0x6c8] sm:$0xff]
    %v314 = vld [vmem:[#allocation5 + $0x6d0] sm:$0xff]
    %v315 = vld [vmem:[#allocation5 + $0x6d8] sm:$0xff]
    %v316 = vld [vmem:[#allocation5 + $0x6e0] sm:$0xff]
    %v317 = vld [vmem:[#allocation5 + $0x6e8] sm:$0xff]
    %v318 = vld [vmem:[#allocation5 + $0x6f0] sm:$0xff]
    %v319 = vld [vmem:[#allocation5 + $0x6f8] sm:$0xff]
    %v320 = vld [vmem:[#allocation5 + $0x700] sm:$0xff]
    %v321 = vld [vmem:[#allocation5 + $0x708] sm:$0xff]
    %v322 = vld [vmem:[#allocation5 + $0x710] sm:$0xff]
    %v323 = vld [vmem:[#allocation5 + $0x718] sm:$0xff]
    %v324 = vld [vmem:[#allocation5 + $0x720] sm:$0xff]
    %v325 = vld [vmem:[#allocation5 + $0x728] sm:$0xff]
    %v326 = vld [vmem:[#allocation5 + $0x730] sm:$0xff]
    %v327 = vld [vmem:[#allocation5 + $0x738] sm:$0xff]
    %v328 = vld [vmem:[#allocation5 + $0x740] sm:$0xff]
    %v329 = vld [vmem:[#allocation5 + $0x748] sm:$0xff]
    %v330 = vld [vmem:[#allocation5 + $0x750] sm:$0xff]
    %v331 = vld [vmem:[#allocation5 + $0x758] sm:$0xff]
    %v332 = vld [vmem:[#allocation5 + $0x760] sm:$0xff]
    %v333 = vld [vmem:[#allocation5 + $0x768] sm:$0xff]
    %v334 = vld [vmem:[#allocation5 + $0x770] sm:$0xff]
    %v335 = vld [vmem:[#allocation5 + $0x778] sm:$0xff]
    %v336 = vld [vmem:[#allocation5 + $0x780] sm:$0xff]
    %v337 = vld [vmem:[#allocation5 + $0x788] sm:$0xff]
    %v338 = vld [vmem:[#allocation5 + $0x790] sm:$0xff]
    %v339 = vld [vmem:[#allocation5 + $0x798] sm:$0xff]
    %v340 = vld [vmem:[#allocation5 + $0x7a0] sm:$0xff]
    %v341 = vld [vmem:[#allocation5 + $0x7a8] sm:$0xff]
    %v342 = vld [vmem:[#allocation5 + $0x7b0] sm:$0xff]
    %v343 = vld [vmem:[#allocation5 + $0x7b8] sm:$0xff]
    %v344 = vld [vmem:[#allocation5 + $0x7c0] sm:$0xff]
    %v345 = vld [vmem:[#allocation5 + $0x7c8] sm:$0xff]
    %v346 = vld [vmem:[#allocation5 + $0x7d0] sm:$0xff]
    %v347 = vld [vmem:[#allocation5 + $0x7d8] sm:$0xff]
    %v348 = vld [vmem:[#allocation5 + $0x7e0] sm:$0xff]
    %v349 = vld [vmem:[#allocation5 + $0x7e8] sm:$0xff]
    %v350 = vld [vmem:[#allocation5 + $0x7f0] sm:$0xff]
    %v351 = vld [vmem:[#allocation5 + $0x7f8] sm:$0xff]
    %v352 = vld [vmem:[#allocation5 + $0x800] sm:$0xff]
    %v353 = vld [vmem:[#allocation5 + $0x808] sm:$0xff]
    %v354 = vld [vmem:[#allocation5 + $0x810] sm:$0xff]
    %v355 = vld [vmem:[#allocation5 + $0x818] sm:$0xff]
    %v356 = vld [vmem:[#allocation5 + $0x820] sm:$0xff]
    %v357 = vld [vmem:[#allocation5 + $0x828] sm:$0xff]
    %v358 = vld [vmem:[#allocation5 + $0x830] sm:$0xff]
    %v359 = vld [vmem:[#allocation5 + $0x838] sm:$0xff]
    %v360 = vld [vmem:[#allocation5 + $0x840] sm:$0xff]
    %v361 = vld [vmem:[#allocation5 + $0x848] sm:$0xff]
    %v362 = vld [vmem:[#allocation5 + $0x850] sm:$0xff]
    %v363 = vld [vmem:[#allocation5 + $0x858] sm:$0xff]
    %v364 = vld [vmem:[#allocation5 + $0x860] sm:$0xff]
    %v365 = vld [vmem:[#allocation5 + $0x868] sm:$0xff]
    %v366 = vld [vmem:[#allocation5 + $0x870] sm:$0xff]
    %v367 = vld [vmem:[#allocation5 + $0x878] sm:$0xff]
    %v368 = vld [vmem:[#allocation5 + $0x880] sm:$0xff]
    %v369 = vld [vmem:[#allocation5 + $0x888] sm:$0xff]
    %v370 = vld [vmem:[#allocation5 + $0x890] sm:$0xff]
    %v371 = vld [vmem:[#allocation5 + $0x898] sm:$0xff]
    %v372 = vld [vmem:[#allocation5 + $0x8a0] sm:$0xff]
    %v373 = vld [vmem:[#allocation5 + $0x8a8] sm:$0xff]
    %v374 = vld [vmem:[#allocation5 + $0x8b0] sm:$0xff]
    %v375 = vld [vmem:[#allocation5 + $0x8b8] sm:$0xff]
    %v376 = vld [vmem:[#allocation5 + $0x8c0] sm:$0xff]
    %v377 = vld [vmem:[#allocation5 + $0x8c8] sm:$0xff]
    %v378 = vld [vmem:[#allocation5 + $0x8d0] sm:$0xff]
    %v379 = vld [vmem:[#allocation5 + $0x8d8] sm:$0xff]
    %v380 = vld [vmem:[#allocation5 + $0x8e0] sm:$0xff]
    %v381 = vld [vmem:[#allocation5 + $0x8e8] sm:$0xff]
    %v382 = vld [vmem:[#allocation5 + $0x8f0] sm:$0xff]
    %v383 = vld [vmem:[#allocation5 + $0x8f8] sm:$0xff]
    %v384 = vld [vmem:[#allocation5 + $0x900] sm:$0xff]
    %v385 = vld [vmem:[#allocation5 + $0x908] sm:$0xff]
    %v386 = vld [vmem:[#allocation5 + $0x910] sm:$0xff]
    %v387 = vld [vmem:[#allocation5 + $0x918] sm:$0xff]
    %v388 = vld [vmem:[#allocation5 + $0x920] sm:$0xff]
    %v389 = vld [vmem:[#allocation5 + $0x928] sm:$0xff]
    %v390 = vld [vmem:[#allocation5 + $0x930] sm:$0xff]
    %v391 = vld [vmem:[#allocation5 + $0x938] sm:$0xff]
    %v392 = vld [vmem:[#allocation5 + $0x940] sm:$0xff]
    %v393 = vld [vmem:[#allocation5 + $0x948] sm:$0xff]
    %v394 = vld [vmem:[#allocation5 + $0x950] sm:$0xff]
    %v395 = vld [vmem:[#allocation5 + $0x958] sm:$0xff]
    %v396 = vld [vmem:[#allocation5 + $0x960] sm:$0xff]
    %v397 = vld [vmem:[#allocation5 + $0x968] sm:$0xff]
    %v398 = vld [vmem:[#allocation5 + $0x970] sm:$0xff]
    %v399 = vld [vmem:[#allocation5 + $0x978] sm:$0xff]
    %v400 = vld [vmem:[#allocation5 + $0x980] sm:$0xff]
    %v401 = vld [vmem:[#allocation5 + $0x988] sm:$0xff]
    %v402 = vld [vmem:[#allocation5 + $0x990] sm:$0xff]
    %v403 = vld [vmem:[#allocation5 + $0x998] sm:$0xff]
    %v404 = vld [vmem:[#allocation5 + $0x9a0] sm:$0xff]
    %v405 = vld [vmem:[#allocation5 + $0x9a8] sm:$0xff]
    %v406 = vld [vmem:[#allocation5 + $0x9b0] sm:$0xff]
    %v407 = vld [vmem:[#allocation5 + $0x9b8] sm:$0xff]
    %v408 = vld [vmem:[#allocation5 + $0x9c0] sm:$0xff]
    %v409 = vld [vmem:[#allocation5 + $0x9c8] sm:$0xff]
    %v410 = vld [vmem:[#allocation5 + $0x9d0] sm:$0xff]
    %v411 = vld [vmem:[#allocation5 + $0x9d8] sm:$0xff]
    %v412 = vld [vmem:[#allocation5 + $0x9e0] sm:$0xff]
    %v413 = vld [vmem:[#allocation5 + $0x9e8] sm:$0xff]
    %v414 = vld [vmem:[#allocation5 + $0x9f0] sm:$0xff]
    %v415 = vld [vmem:[#allocation5 + $0x9f8] sm:$0xff]
    %v416 = vld [vmem:[#allocation5 + $0xa00] sm:$0xff]
    %v417 = vld [vmem:[#allocation5 + $0xa08] sm:$0xff]
    %v418 = vld [vmem:[#allocation5 + $0xa10] sm:$0xff]
    %v419 = vld [vmem:[#allocation5 + $0xa18] sm:$0xff]
    %v420 = vld [vmem:[#allocation5 + $0xa20] sm:$0xff]
    %v421 = vld [vmem:[#allocation5 + $0xa28] sm:$0xff]
    %v422 = vld [vmem:[#allocation5 + $0xa30] sm:$0xff]
    %v423 = vld [vmem:[#allocation5 + $0xa38] sm:$0xff]
    %v424 = vld [vmem:[#allocation5 + $0xa40] sm:$0xff]
    %v425 = vld [vmem:[#allocation5 + $0xa48] sm:$0xff]
    %v426 = vld [vmem:[#allocation5 + $0xa50] sm:$0xff]
    %v427 = vld [vmem:[#allocation5 + $0xa58] sm:$0xff]
    %v428 = vld [vmem:[#allocation5 + $0xa60] sm:$0xff]
    %v429 = vld [vmem:[#allocation5 + $0xa68] sm:$0xff]
    %v430 = vld [vmem:[#allocation5 + $0xa70] sm:$0xff]
    %v431 = vld [vmem:[#allocation5 + $0xa78] sm:$0xff]
    %v432 = vld [vmem:[#allocation5 + $0xa80] sm:$0xff]
    %v433 = vld [vmem:[#allocation5 + $0xa88] sm:$0xff]
    %v434 = vld [vmem:[#allocation5 + $0xa90] sm:$0xff]
    %v435 = vld [vmem:[#allocation5 + $0xa98] sm:$0xff]
    %v436 = vld [vmem:[#allocation5 + $0xaa0] sm:$0xff]
    %v437 = vld [vmem:[#allocation5 + $0xaa8] sm:$0xff]
    %v438 = vld [vmem:[#allocation5 + $0xab0] sm:$0xff]
    %v439 = vld [vmem:[#allocation5 + $0xab8] sm:$0xff]
    %v440 = vld [vmem:[#allocation5 + $0xac0] sm:$0xff]
    %v441 = vld [vmem:[#allocation5 + $0xac8] sm:$0xff]
    %v442 = vld [vmem:[#allocation5 + $0xad0] sm:$0xff]
    %v443 = vld [vmem:[#allocation5 + $0xad8] sm:$0xff]
    %v444 = vld [vmem:[#allocation5 + $0xae0] sm:$0xff]
    %v445 = vld [vmem:[#allocation5 + $0xae8] sm:$0xff]
    %v446 = vld [vmem:[#allocation5 + $0xaf0] sm:$0xff]
    %v447 = vld [vmem:[#allocation5 + $0xaf8] sm:$0xff]
    %v448 = vld [vmem:[#allocation5 + $0xb00] sm:$0xff]
    %v449 = vld [vmem:[#allocation5 + $0xb08] sm:$0xff]
    %v450 = vld [vmem:[#allocation5 + $0xb10] sm:$0xff]
    %v451 = vld [vmem:[#allocation5 + $0xb18] sm:$0xff]
    %v452 = vld [vmem:[#allocation5 + $0xb20] sm:$0xff]
    %v453 = vld [vmem:[#allocation5 + $0xb28] sm:$0xff]
    %v454 = vld [vmem:[#allocation5 + $0xb30] sm:$0xff]
    %v455 = vld [vmem:[#allocation5 + $0xb38] sm:$0xff]
    %v456 = vld [vmem:[#allocation5 + $0xb40] sm:$0xff]
    %v457 = vld [vmem:[#allocation5 + $0xb48] sm:$0xff]
    %v458 = vld [vmem:[#allocation5 + $0xb50] sm:$0xff]
    %v459 = vld [vmem:[#allocation5 + $0xb58] sm:$0xff]
    %v460 = vld [vmem:[#allocation5 + $0xb60] sm:$0xff]
    %v461 = vld [vmem:[#allocation5 + $0xb68] sm:$0xff]
    %v462 = vld [vmem:[#allocation5 + $0xb70] sm:$0xff]
    %v463 = vld [vmem:[#allocation5 + $0xb78] sm:$0xff]
    %v464 = vld [vmem:[#allocation5 + $0xb80] sm:$0xff]
    %v465 = vld [vmem:[#allocation5 + $0xb88] sm:$0xff]
    %v466 = vld [vmem:[#allocation5 + $0xb90] sm:$0xff]
    %v467 = vld [vmem:[#allocation5 + $0xb98] sm:$0xff]
    %v468 = vld [vmem:[#allocation5 + $0xba0] sm:$0xff]
    %v469 = vld [vmem:[#allocation5 + $0xba8] sm:$0xff]
    %v470 = vld [vmem:[#allocation5 + $0xbb0] sm:$0xff]
    %v471 = vld [vmem:[#allocation5 + $0xbb8] sm:$0xff]
    %v472 = vld [vmem:[#allocation5 + $0xbc0] sm:$0xff]
    %v473 = vld [vmem:[#allocation5 + $0xbc8] sm:$0xff]
    %v474 = vld [vmem:[#allocation5 + $0xbd0] sm:$0xff]
    %v475 = vld [vmem:[#allocation5 + $0xbd8] sm:$0xff]
    %v476 = vld [vmem:[#allocation5 + $0xbe0] sm:$0xff]
    %v477 = vld [vmem:[#allocation5 + $0xbe8] sm:$0xff]
    %v478 = vld [vmem:[#allocation5 + $0xbf0] sm:$0xff]
    %v479 = vld [vmem:[#allocation5 + $0xbf8] sm:$0xff]
    %v480 = vld [vmem:[#allocation5 + $0xc00] sm:$0xff]
    %v481 = vld [vmem:[#allocation5 + $0xc08] sm:$0xff]
    %v482 = vld [vmem:[#allocation5 + $0xc10] sm:$0xff]
    %v483 = vld [vmem:[#allocation5 + $0xc18] sm:$0xff]
    %v484 = vld [vmem:[#allocation5 + $0xc20] sm:$0xff]
    %v485 = vld [vmem:[#allocation5 + $0xc28] sm:$0xff]
    %v486 = vld [vmem:[#allocation5 + $0xc30] sm:$0xff]
    %v487 = vld [vmem:[#allocation5 + $0xc38] sm:$0xff]
    %v488 = vld [vmem:[#allocation5 + $0xc40] sm:$0xff]
    %v489 = vld [vmem:[#allocation5 + $0xc48] sm:$0xff]
    %v490 = vld [vmem:[#allocation5 + $0xc50] sm:$0xff]
    %v491 = vld [vmem:[#allocation5 + $0xc58] sm:$0xff]
    %v492 = vld [vmem:[#allocation5 + $0xc60] sm:$0xff]
    %v493 = vld [vmem:[#allocation5 + $0xc68] sm:$0xff]
    %v494 = vld [vmem:[#allocation5 + $0xc70] sm:$0xff]
    %v495 = vld [vmem:[#allocation5 + $0xc78] sm:$0xff]
    %v496 = vld [vmem:[#allocation5 + $0xc80] sm:$0xff]
    %v497 = vld [vmem:[#allocation5 + $0xc88] sm:$0xff]
    %v498 = vld [vmem:[#allocation5 + $0xc90] sm:$0xff]
    %v499 = vld [vmem:[#allocation5 + $0xc98] sm:$0xff]
    %v500 = vld [vmem:[#allocation5 + $0xca0] sm:$0xff]
    %v501 = vld [vmem:[#allocation5 + $0xca8] sm:$0xff]
    %v502 = vld [vmem:[#allocation5 + $0xcb0] sm:$0xff]
    %v503 = vld [vmem:[#allocation5 + $0xcb8] sm:$0xff]
    %v504 = vld [vmem:[#allocation5 + $0xcc0] sm:$0xff]
    %v505 = vld [vmem:[#allocation5 + $0xcc8] sm:$0xff]
    %v506 = vld [vmem:[#allocation5 + $0xcd0] sm:$0xff]
    %v507 = vld [vmem:[#allocation5 + $0xcd8] sm:$0xff]
    %v508 = vld [vmem:[#allocation5 + $0xce0] sm:$0xff]
    %v509 = vld [vmem:[#allocation5 + $0xce8] sm:$0xff]
    %v510 = vld [vmem:[#allocation5 + $0xcf0] sm:$0xff]
    %v511 = vld [vmem:[#allocation5 + $0xcf8] sm:$0xff]
    %v512 = vld [vmem:[#allocation5 + $0xd00] sm:$0xff]
    %v513 = vld [vmem:[#allocation5 + $0xd08] sm:$0xff]
    %v514 = vld [vmem:[#allocation5 + $0xd10] sm:$0xff]
    %v515 = vld [vmem:[#allocation5 + $0xd18] sm:$0xff]
    %v516 = vld [vmem:[#allocation5 + $0xd20] sm:$0xff]
    %v517 = vld [vmem:[#allocation5 + $0xd28] sm:$0xff]
    %v518 = vld [vmem:[#allocation5 + $0xd30] sm:$0xff]
    %v519 = vld [vmem:[#allocation5 + $0xd38] sm:$0xff]
    %v520 = vld [vmem:[#allocation5 + $0xd40] sm:$0xff]
    %v521 = vld [vmem:[#allocation5 + $0xd48] sm:$0xff]
    %v522 = vld [vmem:[#allocation5 + $0xd50] sm:$0xff]
    %v523 = vld [vmem:[#allocation5 + $0xd58] sm:$0xff]
    %v524 = vld [vmem:[#allocation5 + $0xd60] sm:$0xff]
    %v525 = vld [vmem:[#allocation5 + $0xd68] sm:$0xff]
    %v526 = vld [vmem:[#allocation5 + $0xd70] sm:$0xff]
    %v527 = vld [vmem:[#allocation5 + $0xd78] sm:$0xff]
    %v528 = vld [vmem:[#allocation5 + $0xd80] sm:$0xff]
    %v529 = vld [vmem:[#allocation5 + $0xd88] sm:$0xff]
    %v530 = vld [vmem:[#allocation5 + $0xd90] sm:$0xff]
    %v531 = vld [vmem:[#allocation5 + $0xd98] sm:$0xff]
    %v532 = vld [vmem:[#allocation5 + $0xda0] sm:$0xff]
    %v533 = vld [vmem:[#allocation5 + $0xda8] sm:$0xff]
    %v534 = vld [vmem:[#allocation5 + $0xdb0] sm:$0xff]
    %v535 = vld [vmem:[#allocation5 + $0xdb8] sm:$0xff]
    %v536 = vld [vmem:[#allocation5 + $0xdc0] sm:$0xff]
    %v537 = vld [vmem:[#allocation5 + $0xdc8] sm:$0xff]
    %v538 = vld [vmem:[#allocation5 + $0xdd0] sm:$0xff]
    %v539 = vld [vmem:[#allocation5 + $0xdd8] sm:$0xff]
    %v540 = vld [vmem:[#allocation5 + $0xde0] sm:$0xff]
    %v541 = vld [vmem:[#allocation5 + $0xde8] sm:$0xff]
    %v542 = vld [vmem:[#allocation5 + $0xdf0] sm:$0xff]
    %v543 = vld [vmem:[#allocation5 + $0xdf8] sm:$0xff]
    %v608 = vunpack.c.l.b16 %v96
    %v609 = vunpack.c.h.b16 %v96
    %v610 = vunpack.c.l.b16 %v97
    %v611 = vunpack.c.h.b16 %v97
    %v612 = vunpack.c.l.b16 %v98
    %v613 = vunpack.c.h.b16 %v98
    %v614 = vunpack.c.l.b16 %v99
    %v615 = vunpack.c.h.b16 %v99
    %v616 = vunpack.c.l.b16 %v100
    %v617 = vunpack.c.h.b16 %v100
    %v618 = vunpack.c.l.b16 %v101
    %v619 = vunpack.c.h.b16 %v101
    %v620 = vunpack.c.l.b16 %v102
    %v621 = vunpack.c.h.b16 %v102
    %v622 = vunpack.c.l.b16 %v103
    %v623 = vunpack.c.h.b16 %v103
    %v624 = vunpack.c.l.b16 %v104
    %v625 = vunpack.c.h.b16 %v104
    %v626 = vunpack.c.l.b16 %v105
    %v627 = vunpack.c.h.b16 %v105
    %v628 = vunpack.c.l.b16 %v106
    %v629 = vunpack.c.h.b16 %v106
    %v630 = vunpack.c.l.b16 %v107
    %v631 = vunpack.c.h.b16 %v107
    %v632 = vunpack.c.l.b16 %v108
    %v633 = vunpack.c.h.b16 %v108
    %v634 = vunpack.c.l.b16 %v109
    %v635 = vunpack.c.h.b16 %v109
    %v636 = vunpack.c.l.b16 %v110
    %v637 = vunpack.c.h.b16 %v110
    %v638 = vunpack.c.l.b16 %v111
    %v639 = vunpack.c.h.b16 %v111
    %v640 = vunpack.c.l.b16 %v112
    %v641 = vunpack.c.h.b16 %v112
    %v642 = vunpack.c.l.b16 %v113
    %v643 = vunpack.c.h.b16 %v113
    %v644 = vunpack.c.l.b16 %v114
    %v645 = vunpack.c.h.b16 %v114
    %v646 = vunpack.c.l.b16 %v115
    %v647 = vunpack.c.h.b16 %v115
    %v648 = vunpack.c.l.b16 %v116
    %v649 = vunpack.c.h.b16 %v116
    %v650 = vunpack.c.l.b16 %v117
    %v651 = vunpack.c.h.b16 %v117
    %v652 = vunpack.c.l.b16 %v118
    %v653 = vunpack.c.h.b16 %v118
    %v654 = vunpack.c.l.b16 %v119
    %v655 = vunpack.c.h.b16 %v119
    %v656 = vunpack.c.l.b16 %v120
    %v657 = vunpack.c.h.b16 %v120
    %v658 = vunpack.c.l.b16 %v121
    %v659 = vunpack.c.h.b16 %v121
    %v660 = vunpack.c.l.b16 %v122
    %v661 = vunpack.c.h.b16 %v122
    %v662 = vunpack.c.l.b16 %v123
    %v663 = vunpack.c.h.b16 %v123
    %v664 = vunpack.c.l.b16 %v124
    %v665 = vunpack.c.h.b16 %v124
    %v666 = vunpack.c.l.b16 %v125
    %v667 = vunpack.c.h.b16 %v125
    %v668 = vunpack.c.l.b16 %v126
    %v669 = vunpack.c.h.b16 %v126
    %v670 = vunpack.c.l.b16 %v127
    %v671 = vunpack.c.h.b16 %v127
    %v672 = vunpack.c.l.b16 %v128
    %v673 = vunpack.c.h.b16 %v128
    %v674 = vunpack.c.l.b16 %v129
    %v675 = vunpack.c.h.b16 %v129
    %v676 = vunpack.c.l.b16 %v130
    %v677 = vunpack.c.h.b16 %v130
    %v678 = vunpack.c.l.b16 %v131
    %v679 = vunpack.c.h.b16 %v131
    %v680 = vunpack.c.l.b16 %v132
    %v681 = vunpack.c.h.b16 %v132
    %v682 = vunpack.c.l.b16 %v133
    %v683 = vunpack.c.h.b16 %v133
    %v684 = vunpack.c.l.b16 %v134
    %v685 = vunpack.c.h.b16 %v134
    %v686 = vunpack.c.l.b16 %v135
    %v687 = vunpack.c.h.b16 %v135
    %v688 = vunpack.c.l.b16 %v136
    %v689 = vunpack.c.h.b16 %v136
    %v690 = vunpack.c.l.b16 %v137
    %v691 = vunpack.c.h.b16 %v137
    %v692 = vunpack.c.l.b16 %v138
    %v693 = vunpack.c.h.b16 %v138
    %v694 = vunpack.c.l.b16 %v139
    %v695 = vunpack.c.h.b16 %v139
    %v696 = vunpack.c.l.b16 %v140
    %v697 = vunpack.c.h.b16 %v140
    %v698 = vunpack.c.l.b16 %v141
    %v699 = vunpack.c.h.b16 %v141
    %v700 = vunpack.c.l.b16 %v142
    %v701 = vunpack.c.h.b16 %v142
    %v702 = vunpack.c.l.b16 %v143
    %v703 = vunpack.c.h.b16 %v143
    %v704 = vunpack.c.l.b16 %v144
    %v705 = vunpack.c.h.b16 %v144
    %v706 = vunpack.c.l.b16 %v145
    %v707 = vunpack.c.h.b16 %v145
    %v708 = vunpack.c.l.b16 %v146
    %v709 = vunpack.c.h.b16 %v146
    %v710 = vunpack.c.l.b16 %v147
    %v711 = vunpack.c.h.b16 %v147
    %v712 = vunpack.c.l.b16 %v148
    %v713 = vunpack.c.h.b16 %v148
    %v714 = vunpack.c.l.b16 %v149
    %v715 = vunpack.c.h.b16 %v149
    %v716 = vunpack.c.l.b16 %v150
    %v717 = vunpack.c.h.b16 %v150
    %v718 = vunpack.c.l.b16 %v151
    %v719 = vunpack.c.h.b16 %v151
    %v720 = vunpack.c.l.b16 %v152
    %v721 = vunpack.c.h.b16 %v152
    %v722 = vunpack.c.l.b16 %v153
    %v723 = vunpack.c.h.b16 %v153
    %v724 = vunpack.c.l.b16 %v154
    %v725 = vunpack.c.h.b16 %v154
    %v726 = vunpack.c.l.b16 %v155
    %v727 = vunpack.c.h.b16 %v155
    %v728 = vunpack.c.l.b16 %v156
    %v729 = vunpack.c.h.b16 %v156
    %v730 = vunpack.c.l.b16 %v157
    %v731 = vunpack.c.h.b16 %v157
    %v732 = vunpack.c.l.b16 %v158
    %v733 = vunpack.c.h.b16 %v158
    %v734 = vunpack.c.l.b16 %v159
    %v735 = vunpack.c.h.b16 %v159
    %v736 = vpack.c.b16 %v610, %v608
    %v737 = vpack.c.b16 %v611, %v609
    %v738 = vpack.c.b16 %v614, %v612
    %v739 = vpack.c.b16 %v615, %v613
    %v740 = vpack.c.b16 %v618, %v616
    %v741 = vpack.c.b16 %v619, %v617
    %v742 = vpack.c.b16 %v622, %v620
    %v743 = vpack.c.b16 %v623, %v621
    %v744 = vpack.c.b16 %v626, %v624
    %v745 = vpack.c.b16 %v627, %v625
    %v746 = vpack.c.b16 %v630, %v628
    %v747 = vpack.c.b16 %v631, %v629
    %v748 = vpack.c.b16 %v634, %v632
    %v749 = vpack.c.b16 %v635, %v633
    %v750 = vpack.c.b16 %v638, %v636
    %v751 = vpack.c.b16 %v639, %v637
    %v752 = vpack.c.b16 %v642, %v640
    %v753 = vpack.c.b16 %v643, %v641
    %v754 = vpack.c.b16 %v646, %v644
    %v755 = vpack.c.b16 %v647, %v645
    %v756 = vpack.c.b16 %v650, %v648
    %v757 = vpack.c.b16 %v651, %v649
    %v758 = vpack.c.b16 %v654, %v652
    %v759 = vpack.c.b16 %v655, %v653
    %v760 = vpack.c.b16 %v658, %v656
    %v761 = vpack.c.b16 %v659, %v657
    %v762 = vpack.c.b16 %v662, %v660
    %v763 = vpack.c.b16 %v663, %v661
    %v764 = vpack.c.b16 %v666, %v664
    %v765 = vpack.c.b16 %v667, %v665
    %v766 = vpack.c.b16 %v670, %v668
    %v767 = vpack.c.b16 %v671, %v669
    %v768 = vpack.c.b16 %v674, %v672
    %v769 = vpack.c.b16 %v675, %v673
    %v770 = vpack.c.b16 %v678, %v676
    %v771 = vpack.c.b16 %v679, %v677
    %v772 = vpack.c.b16 %v682, %v680
    %v773 = vpack.c.b16 %v683, %v681
    %v774 = vpack.c.b16 %v686, %v684
    %v775 = vpack.c.b16 %v687, %v685
    %v776 = vpack.c.b16 %v690, %v688
    %v777 = vpack.c.b16 %v691, %v689
    %v778 = vpack.c.b16 %v694, %v692
    %v779 = vpack.c.b16 %v695, %v693
    %v780 = vpack.c.b16 %v698, %v696
    %v781 = vpack.c.b16 %v699, %v697
    %v782 = vpack.c.b16 %v702, %v700
    %v783 = vpack.c.b16 %v703, %v701
    %v784 = vpack.c.b16 %v706, %v704
    %v785 = vpack.c.b16 %v707, %v705
    %v786 = vpack.c.b16 %v710, %v708
    %v787 = vpack.c.b16 %v711, %v709
    %v788 = vpack.c.b16 %v714, %v712
    %v789 = vpack.c.b16 %v715, %v713
    %v790 = vpack.c.b16 %v718, %v716
    %v791 = vpack.c.b16 %v719, %v717
    %v792 = vpack.c.b16 %v722, %v720
    %v793 = vpack.c.b16 %v723, %v721
    %v794 = vpack.c.b16 %v726, %v724
    %v795 = vpack.c.b16 %v727, %v725
    %v796 = vpack.c.b16 %v730, %v728
    %v797 = vpack.c.b16 %v731, %v729
    %v798 = vpack.c.b16 %v734, %v732
    %v799 = vpack.c.b16 %v735, %v733
    %864 = vmatprep.subr.bf16.mxu0 %v751
    %865 = vmatpush1.bf16.msra.mxu0 %v750
    %866 = vmatprep.subr.bf16.mxu0 %v749
    %867 = vmatpush1.bf16.msra.mxu0 %v748
    %868 = vmatprep.subr.bf16.mxu0 %v747
    %869 = vmatpush1.bf16.msra.mxu0 %v746
    %870 = vmatprep.subr.bf16.mxu0 %v745
    %871 = vmatpush1.bf16.msra.mxu0 %v744
    %872 = vmatprep.subr.bf16.mxu0 %v743
    %873 = vmatpush1.bf16.msra.mxu0 %v742
    %874 = vmatprep.subr.bf16.mxu0 %v741
    %875 = vmatpush1.bf16.msra.mxu0 %v740
    %876 = vmatprep.subr.bf16.mxu0 %v739
    %877 = vmatpush1.bf16.msra.mxu0 %v738
    %878 = vmatprep.subr.bf16.mxu0 %v737
    %879 = vmatpush1.bf16.msra.mxu0 %v736
    %880 = vmatprep.subr.bf16.mxu0 %v767
    %881 = vmatpush2.bf16.msra.mxu0 %v766
    %882 = vmatprep.subr.bf16.mxu0 %v765
    %883 = vmatpush2.bf16.msra.mxu0 %v764
    %884 = vmatprep.subr.bf16.mxu0 %v763
    %885 = vmatpush2.bf16.msra.mxu0 %v762
    %886 = vmatprep.subr.bf16.mxu0 %v761
    %887 = vmatpush2.bf16.msra.mxu0 %v760
    %888 = vmatprep.subr.bf16.mxu0 %v759
    %889 = vmatpush2.bf16.msra.mxu0 %v758
    %890 = vmatprep.subr.bf16.mxu0 %v757
    %891 = vmatpush2.bf16.msra.mxu0 %v756
    %892 = vmatprep.subr.bf16.mxu0 %v755
    %893 = vmatpush2.bf16.msra.mxu0 %v754
    %894 = vmatprep.subr.bf16.mxu0 %v753
    %895 = vmatpush2.bf16.msra.mxu0 %v752
    %896 = vmatprep.mubr.bf16.mxu0 %v69
    %897 = vmatmul.mubr.bf16.gmra.mxu0 %v68
    %v898 = vpop.f32.mrf.mxu0
    %v899 = vadd.f32 0.0, %v898
    %v900 = vpop.f32.mrf.mxu0
    %v901 = vadd.f32 0.0, %v900
    %v902 = vpop.f32.mrf.mxu0
    %v903 = vpop.f32.mrf.mxu0
    %904 = vdwg.mxu0
    %905 = vmatprep.subr.bf16.mxu0 %v783
    %906 = vmatpush1.bf16.msra.mxu0 %v782
    %907 = vmatprep.subr.bf16.mxu0 %v781
    %908 = vmatpush1.bf16.msra.mxu0 %v780
    %909 = vmatprep.subr.bf16.mxu0 %v779
    %910 = vmatpush1.bf16.msra.mxu0 %v778
    %911 = vmatprep.subr.bf16.mxu0 %v777
    %912 = vmatpush1.bf16.msra.mxu0 %v776
    %913 = vmatprep.subr.bf16.mxu0 %v775
    %914 = vmatpush1.bf16.msra.mxu0 %v774
    %915 = vmatprep.subr.bf16.mxu0 %v773
    %916 = vmatpush1.bf16.msra.mxu0 %v772
    %917 = vmatprep.subr.bf16.mxu0 %v771
    %918 = vmatpush1.bf16.msra.mxu0 %v770
    %919 = vmatprep.subr.bf16.mxu0 %v769
    %920 = vmatpush1.bf16.msra.mxu0 %v768
    %921 = vmatprep.subr.bf16.mxu0 %v799
    %922 = vmatpush2.bf16.msra.mxu0 %v798
    %923 = vmatprep.subr.bf16.mxu0 %v797
    %924 = vmatpush2.bf16.msra.mxu0 %v796
    %925 = vmatprep.subr.bf16.mxu0 %v795
    %926 = vmatpush2.bf16.msra.mxu0 %v794
    %927 = vmatprep.subr.bf16.mxu0 %v793
    %928 = vmatpush2.bf16.msra.mxu0 %v792
    %929 = vmatprep.subr.bf16.mxu0 %v791
    %930 = vmatpush2.bf16.msra.mxu0 %v790
    %931 = vmatprep.subr.bf16.mxu0 %v789
    %932 = vmatpush2.bf16.msra.mxu0 %v788
    %933 = vmatprep.subr.bf16.mxu0 %v787
    %934 = vmatpush2.bf16.msra.mxu0 %v786
    %935 = vmatprep.subr.bf16.mxu0 %v785
    %936 = vmatpush2.bf16.msra.mxu0 %v784
    %937 = vmatprep.mubr.bf16.mxu0 %v71
    %938 = vmatmul.mubr.bf16.gmra.mxu0 %v70
    %v939 = vpop.f32.mrf.mxu0
    %v940 = vadd.f32 %v899, %v939
    %v941 = vpop.f32.mrf.mxu0
    %v942 = vadd.f32 %v901, %v941
    %v943 = vpop.f32.mrf.mxu0
    %v944 = vpop.f32.mrf.mxu0
    %945 = vdwg.mxu0
    %v1010 = vunpack.c.l.b16 %v160
    %v1011 = vunpack.c.h.b16 %v160
    %v1012 = vunpack.c.l.b16 %v161
    %v1013 = vunpack.c.h.b16 %v161
    %v1014 = vunpack.c.l.b16 %v162
    %v1015 = vunpack.c.h.b16 %v162
    %v1016 = vunpack.c.l.b16 %v163
    %v1017 = vunpack.c.h.b16 %v163
    %v1018 = vunpack.c.l.b16 %v164
    %v1019 = vunpack.c.h.b16 %v164
    %v1020 = vunpack.c.l.b16 %v165
    %v1021 = vunpack.c.h.b16 %v165
    %v1022 = vunpack.c.l.b16 %v166
    %v1023 = vunpack.c.h.b16 %v166
    %v1024 = vunpack.c.l.b16 %v167
    %v1025 = vunpack.c.h.b16 %v167
    %v1026 = vunpack.c.l.b16 %v168
    %v1027 = vunpack.c.h.b16 %v168
    %v1028 = vunpack.c.l.b16 %v169
    %v1029 = vunpack.c.h.b16 %v169
    %v1030 = vunpack.c.l.b16 %v170
    %v1031 = vunpack.c.h.b16 %v170
    %v1032 = vunpack.c.l.b16 %v171
    %v1033 = vunpack.c.h.b16 %v171
    %v1034 = vunpack.c.l.b16 %v172
    %v1035 = vunpack.c.h.b16 %v172
    %v1036 = vunpack.c.l.b16 %v173
    %v1037 = vunpack.c.h.b16 %v173
    %v1038 = vunpack.c.l.b16 %v174
    %v1039 = vunpack.c.h.b16 %v174
    %v1040 = vunpack.c.l.b16 %v175
    %v1041 = vunpack.c.h.b16 %v175
    %v1042 = vunpack.c.l.b16 %v176
    %v1043 = vunpack.c.h.b16 %v176
    %v1044 = vunpack.c.l.b16 %v177
    %v1045 = vunpack.c.h.b16 %v177
    %v1046 = vunpack.c.l.b16 %v178
    %v1047 = vunpack.c.h.b16 %v178
    %v1048 = vunpack.c.l.b16 %v179
    %v1049 = vunpack.c.h.b16 %v179
    %v1050 = vunpack.c.l.b16 %v180
    %v1051 = vunpack.c.h.b16 %v180
    %v1052 = vunpack.c.l.b16 %v181
    %v1053 = vunpack.c.h.b16 %v181
    %v1054 = vunpack.c.l.b16 %v182
    %v1055 = vunpack.c.h.b16 %v182
    %v1056 = vunpack.c.l.b16 %v183
    %v1057 = vunpack.c.h.b16 %v183
    %v1058 = vunpack.c.l.b16 %v184
    %v1059 = vunpack.c.h.b16 %v184
    %v1060 = vunpack.c.l.b16 %v185
    %v1061 = vunpack.c.h.b16 %v185
    %v1062 = vunpack.c.l.b16 %v186
    %v1063 = vunpack.c.h.b16 %v186
    %v1064 = vunpack.c.l.b16 %v187
    %v1065 = vunpack.c.h.b16 %v187
    %v1066 = vunpack.c.l.b16 %v188
    %v1067 = vunpack.c.h.b16 %v188
    %v1068 = vunpack.c.l.b16 %v189
    %v1069 = vunpack.c.h.b16 %v189
    %v1070 = vunpack.c.l.b16 %v190
    %v1071 = vunpack.c.h.b16 %v190
    %v1072 = vunpack.c.l.b16 %v191
    %v1073 = vunpack.c.h.b16 %v191
    %v1074 = vunpack.c.l.b16 %v192
    %v1075 = vunpack.c.h.b16 %v192
    %v1076 = vunpack.c.l.b16 %v193
    %v1077 = vunpack.c.h.b16 %v193
    %v1078 = vunpack.c.l.b16 %v194
    %v1079 = vunpack.c.h.b16 %v194
    %v1080 = vunpack.c.l.b16 %v195
    %v1081 = vunpack.c.h.b16 %v195
    %v1082 = vunpack.c.l.b16 %v196
    %v1083 = vunpack.c.h.b16 %v196
    %v1084 = vunpack.c.l.b16 %v197
    %v1085 = vunpack.c.h.b16 %v197
    %v1086 = vunpack.c.l.b16 %v198
    %v1087 = vunpack.c.h.b16 %v198
    %v1088 = vunpack.c.l.b16 %v199
    %v1089 = vunpack.c.h.b16 %v199
    %v1090 = vunpack.c.l.b16 %v200
    %v1091 = vunpack.c.h.b16 %v200
    %v1092 = vunpack.c.l.b16 %v201
    %v1093 = vunpack.c.h.b16 %v201
    %v1094 = vunpack.c.l.b16 %v202
    %v1095 = vunpack.c.h.b16 %v202
    %v1096 = vunpack.c.l.b16 %v203
    %v1097 = vunpack.c.h.b16 %v203
    %v1098 = vunpack.c.l.b16 %v204
    %v1099 = vunpack.c.h.b16 %v204
    %v1100 = vunpack.c.l.b16 %v205
    %v1101 = vunpack.c.h.b16 %v205
    %v1102 = vunpack.c.l.b16 %v206
    %v1103 = vunpack.c.h.b16 %v206
    %v1104 = vunpack.c.l.b16 %v207
    %v1105 = vunpack.c.h.b16 %v207
    %v1106 = vunpack.c.l.b16 %v208
    %v1107 = vunpack.c.h.b16 %v208
    %v1108 = vunpack.c.l.b16 %v209
    %v1109 = vunpack.c.h.b16 %v209
    %v1110 = vunpack.c.l.b16 %v210
    %v1111 = vunpack.c.h.b16 %v210
    %v1112 = vunpack.c.l.b16 %v211
    %v1113 = vunpack.c.h.b16 %v211
    %v1114 = vunpack.c.l.b16 %v212
    %v1115 = vunpack.c.h.b16 %v212
    %v1116 = vunpack.c.l.b16 %v213
    %v1117 = vunpack.c.h.b16 %v213
    %v1118 = vunpack.c.l.b16 %v214
    %v1119 = vunpack.c.h.b16 %v214
    %v1120 = vunpack.c.l.b16 %v215
    %v1121 = vunpack.c.h.b16 %v215
    %v1122 = vunpack.c.l.b16 %v216
    %v1123 = vunpack.c.h.b16 %v216
    %v1124 = vunpack.c.l.b16 %v217
    %v1125 = vunpack.c.h.b16 %v217
    %v1126 = vunpack.c.l.b16 %v218
    %v1127 = vunpack.c.h.b16 %v218
    %v1128 = vunpack.c.l.b16 %v219
    %v1129 = vunpack.c.h.b16 %v219
    %v1130 = vunpack.c.l.b16 %v220
    %v1131 = vunpack.c.h.b16 %v220
    %v1132 = vunpack.c.l.b16 %v221
    %v1133 = vunpack.c.h.b16 %v221
    %v1134 = vunpack.c.l.b16 %v222
    %v1135 = vunpack.c.h.b16 %v222
    %v1136 = vunpack.c.l.b16 %v223
    %v1137 = vunpack.c.h.b16 %v223
    %v1138 = vpack.c.b16 %v1012, %v1010
    %v1139 = vpack.c.b16 %v1013, %v1011
    %v1140 = vpack.c.b16 %v1016, %v1014
    %v1141 = vpack.c.b16 %v1017, %v1015
    %v1142 = vpack.c.b16 %v1020, %v1018
    %v1143 = vpack.c.b16 %v1021, %v1019
    %v1144 = vpack.c.b16 %v1024, %v1022
    %v1145 = vpack.c.b16 %v1025, %v1023
    %v1146 = vpack.c.b16 %v1028, %v1026
    %v1147 = vpack.c.b16 %v1029, %v1027
    %v1148 = vpack.c.b16 %v1032, %v1030
    %v1149 = vpack.c.b16 %v1033, %v1031
    %v1150 = vpack.c.b16 %v1036, %v1034
    %v1151 = vpack.c.b16 %v1037, %v1035
    %v1152 = vpack.c.b16 %v1040, %v1038
    %v1153 = vpack.c.b16 %v1041, %v1039
    %v1154 = vpack.c.b16 %v1044, %v1042
    %v1155 = vpack.c.b16 %v1045, %v1043
    %v1156 = vpack.c.b16 %v1048, %v1046
    %v1157 = vpack.c.b16 %v1049, %v1047
    %v1158 = vpack.c.b16 %v1052, %v1050
    %v1159 = vpack.c.b16 %v1053, %v1051
    %v1160 = vpack.c.b16 %v1056, %v1054
    %v1161 = vpack.c.b16 %v1057, %v1055
    %v1162 = vpack.c.b16 %v1060, %v1058
    %v1163 = vpack.c.b16 %v1061, %v1059
    %v1164 = vpack.c.b16 %v1064, %v1062
    %v1165 = vpack.c.b16 %v1065, %v1063
    %v1166 = vpack.c.b16 %v1068, %v1066
    %v1167 = vpack.c.b16 %v1069, %v1067
    %v1168 = vpack.c.b16 %v1072, %v1070
    %v1169 = vpack.c.b16 %v1073, %v1071
    %v1170 = vpack.c.b16 %v1076, %v1074
    %v1171 = vpack.c.b16 %v1077, %v1075
    %v1172 = vpack.c.b16 %v1080, %v1078
    %v1173 = vpack.c.b16 %v1081, %v1079
    %v1174 = vpack.c.b16 %v1084, %v1082
    %v1175 = vpack.c.b16 %v1085, %v1083
    %v1176 = vpack.c.b16 %v1088, %v1086
    %v1177 = vpack.c.b16 %v1089, %v1087
    %v1178 = vpack.c.b16 %v1092, %v1090
    %v1179 = vpack.c.b16 %v1093, %v1091
    %v1180 = vpack.c.b16 %v1096, %v1094
    %v1181 = vpack.c.b16 %v1097, %v1095
    %v1182 = vpack.c.b16 %v1100, %v1098
    %v1183 = vpack.c.b16 %v1101, %v1099
    %v1184 = vpack.c.b16 %v1104, %v1102
    %v1185 = vpack.c.b16 %v1105, %v1103
    %v1186 = vpack.c.b16 %v1108, %v1106
    %v1187 = vpack.c.b16 %v1109, %v1107
    %v1188 = vpack.c.b16 %v1112, %v1110
    %v1189 = vpack.c.b16 %v1113, %v1111
    %v1190 = vpack.c.b16 %v1116, %v1114
    %v1191 = vpack.c.b16 %v1117, %v1115
    %v1192 = vpack.c.b16 %v1120, %v1118
    %v1193 = vpack.c.b16 %v1121, %v1119
    %v1194 = vpack.c.b16 %v1124, %v1122
    %v1195 = vpack.c.b16 %v1125, %v1123
    %v1196 = vpack.c.b16 %v1128, %v1126
    %v1197 = vpack.c.b16 %v1129, %v1127
    %v1198 = vpack.c.b16 %v1132, %v1130
    %v1199 = vpack.c.b16 %v1133, %v1131
    %v1200 = vpack.c.b16 %v1136, %v1134
    %v1201 = vpack.c.b16 %v1137, %v1135
    %1266 = vmatprep.subr.bf16.mxu0 %v1153
    %1267 = vmatpush1.bf16.msra.mxu0 %v1152
    %1268 = vmatprep.subr.bf16.mxu0 %v1151
    %1269 = vmatpush1.bf16.msra.mxu0 %v1150
    %1270 = vmatprep.subr.bf16.mxu0 %v1149
    %1271 = vmatpush1.bf16.msra.mxu0 %v1148
    %1272 = vmatprep.subr.bf16.mxu0 %v1147
    %1273 = vmatpush1.bf16.msra.mxu0 %v1146
    %1274 = vmatprep.subr.bf16.mxu0 %v1145
    %1275 = vmatpush1.bf16.msra.mxu0 %v1144
    %1276 = vmatprep.subr.bf16.mxu0 %v1143
    %1277 = vmatpush1.bf16.msra.mxu0 %v1142
    %1278 = vmatprep.subr.bf16.mxu0 %v1141
    %1279 = vmatpush1.bf16.msra.mxu0 %v1140
    %1280 = vmatprep.subr.bf16.mxu0 %v1139
    %1281 = vmatpush1.bf16.msra.mxu0 %v1138
    %1282 = vmatprep.subr.bf16.mxu0 %v1169
    %1283 = vmatpush2.bf16.msra.mxu0 %v1168
    %1284 = vmatprep.subr.bf16.mxu0 %v1167
    %1285 = vmatpush2.bf16.msra.mxu0 %v1166
    %1286 = vmatprep.subr.bf16.mxu0 %v1165
    %1287 = vmatpush2.bf16.msra.mxu0 %v1164
    %1288 = vmatprep.subr.bf16.mxu0 %v1163
    %1289 = vmatpush2.bf16.msra.mxu0 %v1162
    %1290 = vmatprep.subr.bf16.mxu0 %v1161
    %1291 = vmatpush2.bf16.msra.mxu0 %v1160
    %1292 = vmatprep.subr.bf16.mxu0 %v1159
    %1293 = vmatpush2.bf16.msra.mxu0 %v1158
    %1294 = vmatprep.subr.bf16.mxu0 %v1157
    %1295 = vmatpush2.bf16.msra.mxu0 %v1156
    %1296 = vmatprep.subr.bf16.mxu0 %v1155
    %1297 = vmatpush2.bf16.msra.mxu0 %v1154
    %1298 = vmatprep.mubr.bf16.mxu0 %v73
    %1299 = vmatmul.mubr.bf16.gmra.mxu0 %v72
    %v1300 = vpop.f32.mrf.mxu0
    %v1301 = vadd.f32 0.0, %v1300
    %v1302 = vpop.f32.mrf.mxu0
    %v1303 = vadd.f32 0.0, %v1302
    %v1304 = vpop.f32.mrf.mxu0
    %v1305 = vpop.f32.mrf.mxu0
    %1306 = vdwg.mxu0
    %1307 = vmatprep.subr.bf16.mxu0 %v1185
    %1308 = vmatpush1.bf16.msra.mxu0 %v1184
    %1309 = vmatprep.subr.bf16.mxu0 %v1183
    %1310 = vmatpush1.bf16.msra.mxu0 %v1182
    %1311 = vmatprep.subr.bf16.mxu0 %v1181
    %1312 = vmatpush1.bf16.msra.mxu0 %v1180
    %1313 = vmatprep.subr.bf16.mxu0 %v1179
    %1314 = vmatpush1.bf16.msra.mxu0 %v1178
    %1315 = vmatprep.subr.bf16.mxu0 %v1177
    %1316 = vmatpush1.bf16.msra.mxu0 %v1176
    %1317 = vmatprep.subr.bf16.mxu0 %v1175
    %1318 = vmatpush1.bf16.msra.mxu0 %v1174
    %1319 = vmatprep.subr.bf16.mxu0 %v1173
    %1320 = vmatpush1.bf16.msra.mxu0 %v1172
    %1321 = vmatprep.subr.bf16.mxu0 %v1171
    %1322 = vmatpush1.bf16.msra.mxu0 %v1170
    %1323 = vmatprep.subr.bf16.mxu0 %v1201
    %1324 = vmatpush2.bf16.msra.mxu0 %v1200
    %1325 = vmatprep.subr.bf16.mxu0 %v1199
    %1326 = vmatpush2.bf16.msra.mxu0 %v1198
    %1327 = vmatprep.subr.bf16.mxu0 %v1197
    %1328 = vmatpush2.bf16.msra.mxu0 %v1196
    %1329 = vmatprep.subr.bf16.mxu0 %v1195
    %1330 = vmatpush2.bf16.msra.mxu0 %v1194
    %1331 = vmatprep.subr.bf16.mxu0 %v1193
    %1332 = vmatpush2.bf16.msra.mxu0 %v1192
    %1333 = vmatprep.subr.bf16.mxu0 %v1191
    %1334 = vmatpush2.bf16.msra.mxu0 %v1190
    %1335 = vmatprep.subr.bf16.mxu0 %v1189
    %1336 = vmatpush2.bf16.msra.mxu0 %v1188
    %1337 = vmatprep.subr.bf16.mxu0 %v1187
    %1338 = vmatpush2.bf16.msra.mxu0 %v1186
    %1339 = vmatprep.mubr.bf16.mxu0 %v75
    %1340 = vmatmul.mubr.bf16.gmra.mxu0 %v74
    %v1341 = vpop.f32.mrf.mxu0
    %v1342 = vadd.f32 %v1301, %v1341
    %v1343 = vpop.f32.mrf.mxu0
    %v1344 = vadd.f32 %v1303, %v1343
    %v1345 = vpop.f32.mrf.mxu0
    %v1346 = vpop.f32.mrf.mxu0
    %1347 = vdwg.mxu0
    %v1412 = vunpack.c.l.b16 %v224
    %v1413 = vunpack.c.h.b16 %v224
    %v1414 = vunpack.c.l.b16 %v225
    %v1415 = vunpack.c.h.b16 %v225
    %v1416 = vunpack.c.l.b16 %v226
    %v1417 = vunpack.c.h.b16 %v226
    %v1418 = vunpack.c.l.b16 %v227
    %v1419 = vunpack.c.h.b16 %v227
    %v1420 = vunpack.c.l.b16 %v228
    %v1421 = vunpack.c.h.b16 %v228
    %v1422 = vunpack.c.l.b16 %v229
    %v1423 = vunpack.c.h.b16 %v229
    %v1424 = vunpack.c.l.b16 %v230
    %v1425 = vunpack.c.h.b16 %v230
    %v1426 = vunpack.c.l.b16 %v231
    %v1427 = vunpack.c.h.b16 %v231
    %v1428 = vunpack.c.l.b16 %v232
    %v1429 = vunpack.c.h.b16 %v232
    %v1430 = vunpack.c.l.b16 %v233
    %v1431 = vunpack.c.h.b16 %v233
    %v1432 = vunpack.c.l.b16 %v234
    %v1433 = vunpack.c.h.b16 %v234
    %v1434 = vunpack.c.l.b16 %v235
    %v1435 = vunpack.c.h.b16 %v235
    %v1436 = vunpack.c.l.b16 %v236
    %v1437 = vunpack.c.h.b16 %v236
    %v1438 = vunpack.c.l.b16 %v237
    %v1439 = vunpack.c.h.b16 %v237
    %v1440 = vunpack.c.l.b16 %v238
    %v1441 = vunpack.c.h.b16 %v238
    %v1442 = vunpack.c.l.b16 %v239
    %v1443 = vunpack.c.h.b16 %v239
    %v1444 = vunpack.c.l.b16 %v240
    %v1445 = vunpack.c.h.b16 %v240
    %v1446 = vunpack.c.l.b16 %v241
    %v1447 = vunpack.c.h.b16 %v241
    %v1448 = vunpack.c.l.b16 %v242
    %v1449 = vunpack.c.h.b16 %v242
    %v1450 = vunpack.c.l.b16 %v243
    %v1451 = vunpack.c.h.b16 %v243
    %v1452 = vunpack.c.l.b16 %v244
    %v1453 = vunpack.c.h.b16 %v244
    %v1454 = vunpack.c.l.b16 %v245
    %v1455 = vunpack.c.h.b16 %v245
    %v1456 = vunpack.c.l.b16 %v246
    %v1457 = vunpack.c.h.b16 %v246
    %v1458 = vunpack.c.l.b16 %v247
    %v1459 = vunpack.c.h.b16 %v247
    %v1460 = vunpack.c.l.b16 %v248
    %v1461 = vunpack.c.h.b16 %v248
    %v1462 = vunpack.c.l.b16 %v249
    %v1463 = vunpack.c.h.b16 %v249
    %v1464 = vunpack.c.l.b16 %v250
    %v1465 = vunpack.c.h.b16 %v250
    %v1466 = vunpack.c.l.b16 %v251
    %v1467 = vunpack.c.h.b16 %v251
    %v1468 = vunpack.c.l.b16 %v252
    %v1469 = vunpack.c.h.b16 %v252
    %v1470 = vunpack.c.l.b16 %v253
    %v1471 = vunpack.c.h.b16 %v253
    %v1472 = vunpack.c.l.b16 %v254
    %v1473 = vunpack.c.h.b16 %v254
    %v1474 = vunpack.c.l.b16 %v255
    %v1475 = vunpack.c.h.b16 %v255
    %v1476 = vunpack.c.l.b16 %v256
    %v1477 = vunpack.c.h.b16 %v256
    %v1478 = vunpack.c.l.b16 %v257
    %v1479 = vunpack.c.h.b16 %v257
    %v1480 = vunpack.c.l.b16 %v258
    %v1481 = vunpack.c.h.b16 %v258
    %v1482 = vunpack.c.l.b16 %v259
    %v1483 = vunpack.c.h.b16 %v259
    %v1484 = vunpack.c.l.b16 %v260
    %v1485 = vunpack.c.h.b16 %v260
    %v1486 = vunpack.c.l.b16 %v261
    %v1487 = vunpack.c.h.b16 %v261
    %v1488 = vunpack.c.l.b16 %v262
    %v1489 = vunpack.c.h.b16 %v262
    %v1490 = vunpack.c.l.b16 %v263
    %v1491 = vunpack.c.h.b16 %v263
    %v1492 = vunpack.c.l.b16 %v264
    %v1493 = vunpack.c.h.b16 %v264
    %v1494 = vunpack.c.l.b16 %v265
    %v1495 = vunpack.c.h.b16 %v265
    %v1496 = vunpack.c.l.b16 %v266
    %v1497 = vunpack.c.h.b16 %v266
    %v1498 = vunpack.c.l.b16 %v267
    %v1499 = vunpack.c.h.b16 %v267
    %v1500 = vunpack.c.l.b16 %v268
    %v1501 = vunpack.c.h.b16 %v268
    %v1502 = vunpack.c.l.b16 %v269
    %v1503 = vunpack.c.h.b16 %v269
    %v1504 = vunpack.c.l.b16 %v270
    %v1505 = vunpack.c.h.b16 %v270
    %v1506 = vunpack.c.l.b16 %v271
    %v1507 = vunpack.c.h.b16 %v271
    %v1508 = vunpack.c.l.b16 %v272
    %v1509 = vunpack.c.h.b16 %v272
    %v1510 = vunpack.c.l.b16 %v273
    %v1511 = vunpack.c.h.b16 %v273
    %v1512 = vunpack.c.l.b16 %v274
    %v1513 = vunpack.c.h.b16 %v274
    %v1514 = vunpack.c.l.b16 %v275
    %v1515 = vunpack.c.h.b16 %v275
    %v1516 = vunpack.c.l.b16 %v276
    %v1517 = vunpack.c.h.b16 %v276
    %v1518 = vunpack.c.l.b16 %v277
    %v1519 = vunpack.c.h.b16 %v277
    %v1520 = vunpack.c.l.b16 %v278
    %v1521 = vunpack.c.h.b16 %v278
    %v1522 = vunpack.c.l.b16 %v279
    %v1523 = vunpack.c.h.b16 %v279
    %v1524 = vunpack.c.l.b16 %v280
    %v1525 = vunpack.c.h.b16 %v280
    %v1526 = vunpack.c.l.b16 %v281
    %v1527 = vunpack.c.h.b16 %v281
    %v1528 = vunpack.c.l.b16 %v282
    %v1529 = vunpack.c.h.b16 %v282
    %v1530 = vunpack.c.l.b16 %v283
    %v1531 = vunpack.c.h.b16 %v283
    %v1532 = vunpack.c.l.b16 %v284
    %v1533 = vunpack.c.h.b16 %v284
    %v1534 = vunpack.c.l.b16 %v285
    %v1535 = vunpack.c.h.b16 %v285
    %v1536 = vunpack.c.l.b16 %v286
    %v1537 = vunpack.c.h.b16 %v286
    %v1538 = vunpack.c.l.b16 %v287
    %v1539 = vunpack.c.h.b16 %v287
    %v1540 = vpack.c.b16 %v1414, %v1412
    %v1541 = vpack.c.b16 %v1415, %v1413
    %v1542 = vpack.c.b16 %v1418, %v1416
    %v1543 = vpack.c.b16 %v1419, %v1417
    %v1544 = vpack.c.b16 %v1422, %v1420
    %v1545 = vpack.c.b16 %v1423, %v1421
    %v1546 = vpack.c.b16 %v1426, %v1424
    %v1547 = vpack.c.b16 %v1427, %v1425
    %v1548 = vpack.c.b16 %v1430, %v1428
    %v1549 = vpack.c.b16 %v1431, %v1429
    %v1550 = vpack.c.b16 %v1434, %v1432
    %v1551 = vpack.c.b16 %v1435, %v1433
    %v1552 = vpack.c.b16 %v1438, %v1436
    %v1553 = vpack.c.b16 %v1439, %v1437
    %v1554 = vpack.c.b16 %v1442, %v1440
    %v1555 = vpack.c.b16 %v1443, %v1441
    %v1556 = vpack.c.b16 %v1446, %v1444
    %v1557 = vpack.c.b16 %v1447, %v1445
    %v1558 = vpack.c.b16 %v1450, %v1448
    %v1559 = vpack.c.b16 %v1451, %v1449
    %v1560 = vpack.c.b16 %v1454, %v1452
    %v1561 = vpack.c.b16 %v1455, %v1453
    %v1562 = vpack.c.b16 %v1458, %v1456
    %v1563 = vpack.c.b16 %v1459, %v1457
    %v1564 = vpack.c.b16 %v1462, %v1460
    %v1565 = vpack.c.b16 %v1463, %v1461
    %v1566 = vpack.c.b16 %v1466, %v1464
    %v1567 = vpack.c.b16 %v1467, %v1465
    %v1568 = vpack.c.b16 %v1470, %v1468
    %v1569 = vpack.c.b16 %v1471, %v1469
    %v1570 = vpack.c.b16 %v1474, %v1472
    %v1571 = vpack.c.b16 %v1475, %v1473
    %v1572 = vpack.c.b16 %v1478, %v1476
    %v1573 = vpack.c.b16 %v1479, %v1477
    %v1574 = vpack.c.b16 %v1482, %v1480
    %v1575 = vpack.c.b16 %v1483, %v1481
    %v1576 = vpack.c.b16 %v1486, %v1484
    %v1577 = vpack.c.b16 %v1487, %v1485
    %v1578 = vpack.c.b16 %v1490, %v1488
    %v1579 = vpack.c.b16 %v1491, %v1489
    %v1580 = vpack.c.b16 %v1494, %v1492
    %v1581 = vpack.c.b16 %v1495, %v1493
    %v1582 = vpack.c.b16 %v1498, %v1496
    %v1583 = vpack.c.b16 %v1499, %v1497
    %v1584 = vpack.c.b16 %v1502, %v1500
    %v1585 = vpack.c.b16 %v1503, %v1501
    %v1586 = vpack.c.b16 %v1506, %v1504
    %v1587 = vpack.c.b16 %v1507, %v1505
    %v1588 = vpack.c.b16 %v1510, %v1508
    %v1589 = vpack.c.b16 %v1511, %v1509
    %v1590 = vpack.c.b16 %v1514, %v1512
    %v1591 = vpack.c.b16 %v1515, %v1513
    %v1592 = vpack.c.b16 %v1518, %v1516
    %v1593 = vpack.c.b16 %v1519, %v1517
    %v1594 = vpack.c.b16 %v1522, %v1520
    %v1595 = vpack.c.b16 %v1523, %v1521
    %v1596 = vpack.c.b16 %v1526, %v1524
    %v1597 = vpack.c.b16 %v1527, %v1525
    %v1598 = vpack.c.b16 %v1530, %v1528
    %v1599 = vpack.c.b16 %v1531, %v1529
    %v1600 = vpack.c.b16 %v1534, %v1532
    %v1601 = vpack.c.b16 %v1535, %v1533
    %v1602 = vpack.c.b16 %v1538, %v1536
    %v1603 = vpack.c.b16 %v1539, %v1537
    %1668 = vmatprep.subr.bf16.mxu0 %v1555
    %1669 = vmatpush1.bf16.msra.mxu0 %v1554
    %1670 = vmatprep.subr.bf16.mxu0 %v1553
    %1671 = vmatpush1.bf16.msra.mxu0 %v1552
    %1672 = vmatprep.subr.bf16.mxu0 %v1551
    %1673 = vmatpush1.bf16.msra.mxu0 %v1550
    %1674 = vmatprep.subr.bf16.mxu0 %v1549
    %1675 = vmatpush1.bf16.msra.mxu0 %v1548
    %1676 = vmatprep.subr.bf16.mxu0 %v1547
    %1677 = vmatpush1.bf16.msra.mxu0 %v1546
    %1678 = vmatprep.subr.bf16.mxu0 %v1545
    %1679 = vmatpush1.bf16.msra.mxu0 %v1544
    %1680 = vmatprep.subr.bf16.mxu0 %v1543
    %1681 = vmatpush1.bf16.msra.mxu0 %v1542
    %1682 = vmatprep.subr.bf16.mxu0 %v1541
    %1683 = vmatpush1.bf16.msra.mxu0 %v1540
    %1684 = vmatprep.subr.bf16.mxu0 %v1571
    %1685 = vmatpush2.bf16.msra.mxu0 %v1570
    %1686 = vmatprep.subr.bf16.mxu0 %v1569
    %1687 = vmatpush2.bf16.msra.mxu0 %v1568
    %1688 = vmatprep.subr.bf16.mxu0 %v1567
    %1689 = vmatpush2.bf16.msra.mxu0 %v1566
    %1690 = vmatprep.subr.bf16.mxu0 %v1565
    %1691 = vmatpush2.bf16.msra.mxu0 %v1564
    %1692 = vmatprep.subr.bf16.mxu0 %v1563
    %1693 = vmatpush2.bf16.msra.mxu0 %v1562
    %1694 = vmatprep.subr.bf16.mxu0 %v1561
    %1695 = vmatpush2.bf16.msra.mxu0 %v1560
    %1696 = vmatprep.subr.bf16.mxu0 %v1559
    %1697 = vmatpush2.bf16.msra.mxu0 %v1558
    %1698 = vmatprep.subr.bf16.mxu0 %v1557
    %1699 = vmatpush2.bf16.msra.mxu0 %v1556
    %1700 = vmatprep.mubr.bf16.mxu0 %v77
    %1701 = vmatmul.mubr.bf16.gmra.mxu0 %v76
    %v1702 = vpop.f32.mrf.mxu0
    %v1703 = vadd.f32 0.0, %v1702
    %v1704 = vpop.f32.mrf.mxu0
    %v1705 = vadd.f32 0.0, %v1704
    %v1706 = vpop.f32.mrf.mxu0
    %v1707 = vpop.f32.mrf.mxu0
    %1708 = vdwg.mxu0
    %1709 = vmatprep.subr.bf16.mxu0 %v1587
    %1710 = vmatpush1.bf16.msra.mxu0 %v1586
    %1711 = vmatprep.subr.bf16.mxu0 %v1585
    %1712 = vmatpush1.bf16.msra.mxu0 %v1584
    %1713 = vmatprep.subr.bf16.mxu0 %v1583
    %1714 = vmatpush1.bf16.msra.mxu0 %v1582
    %1715 = vmatprep.subr.bf16.mxu0 %v1581
    %1716 = vmatpush1.bf16.msra.mxu0 %v1580
    %1717 = vmatprep.subr.bf16.mxu0 %v1579
    %1718 = vmatpush1.bf16.msra.mxu0 %v1578
    %1719 = vmatprep.subr.bf16.mxu0 %v1577
    %1720 = vmatpush1.bf16.msra.mxu0 %v1576
    %1721 = vmatprep.subr.bf16.mxu0 %v1575
    %1722 = vmatpush1.bf16.msra.mxu0 %v1574
    %1723 = vmatprep.subr.bf16.mxu0 %v1573
    %1724 = vmatpush1.bf16.msra.mxu0 %v1572
    %1725 = vmatprep.subr.bf16.mxu0 %v1603
    %1726 = vmatpush2.bf16.msra.mxu0 %v1602
    %1727 = vmatprep.subr.bf16.mxu0 %v1601
    %1728 = vmatpush2.bf16.msra.mxu0 %v1600
    %1729 = vmatprep.subr.bf16.mxu0 %v1599
    %1730 = vmatpush2.bf16.msra.mxu0 %v1598
    %1731 = vmatprep.subr.bf16.mxu0 %v1597
    %1732 = vmatpush2.bf16.msra.mxu0 %v1596
    %1733 = vmatprep.subr.bf16.mxu0 %v1595
    %1734 = vmatpush2.bf16.msra.mxu0 %v1594
    %1735 = vmatprep.subr.bf16.mxu0 %v1593
    %1736 = vmatpush2.bf16.msra.mxu0 %v1592
    %1737 = vmatprep.subr.bf16.mxu0 %v1591
    %1738 = vmatpush2.bf16.msra.mxu0 %v1590
    %1739 = vmatprep.subr.bf16.mxu0 %v1589
    %1740 = vmatpush2.bf16.msra.mxu0 %v1588
    %1741 = vmatprep.mubr.bf16.mxu0 %v79
    %1742 = vmatmul.mubr.bf16.gmra.mxu0 %v78
    %v1743 = vpop.f32.mrf.mxu0
    %v1744 = vadd.f32 %v1703, %v1743
    %v1745 = vpop.f32.mrf.mxu0
    %v1746 = vadd.f32 %v1705, %v1745
    %v1747 = vpop.f32.mrf.mxu0
    %v1748 = vpop.f32.mrf.mxu0
    %1749 = vdwg.mxu0
    %v1814 = vunpack.c.l.b16 %v288
    %v1815 = vunpack.c.h.b16 %v288
    %v1816 = vunpack.c.l.b16 %v289
    %v1817 = vunpack.c.h.b16 %v289
    %v1818 = vunpack.c.l.b16 %v290
    %v1819 = vunpack.c.h.b16 %v290
    %v1820 = vunpack.c.l.b16 %v291
    %v1821 = vunpack.c.h.b16 %v291
    %v1822 = vunpack.c.l.b16 %v292
    %v1823 = vunpack.c.h.b16 %v292
    %v1824 = vunpack.c.l.b16 %v293
    %v1825 = vunpack.c.h.b16 %v293
    %v1826 = vunpack.c.l.b16 %v294
    %v1827 = vunpack.c.h.b16 %v294
    %v1828 = vunpack.c.l.b16 %v295
    %v1829 = vunpack.c.h.b16 %v295
    %v1830 = vunpack.c.l.b16 %v296
    %v1831 = vunpack.c.h.b16 %v296
    %v1832 = vunpack.c.l.b16 %v297
    %v1833 = vunpack.c.h.b16 %v297
    %v1834 = vunpack.c.l.b16 %v298
    %v1835 = vunpack.c.h.b16 %v298
    %v1836 = vunpack.c.l.b16 %v299
    %v1837 = vunpack.c.h.b16 %v299
    %v1838 = vunpack.c.l.b16 %v300
    %v1839 = vunpack.c.h.b16 %v300
    %v1840 = vunpack.c.l.b16 %v301
    %v1841 = vunpack.c.h.b16 %v301
    %v1842 = vunpack.c.l.b16 %v302
    %v1843 = vunpack.c.h.b16 %v302
    %v1844 = vunpack.c.l.b16 %v303
    %v1845 = vunpack.c.h.b16 %v303
    %v1846 = vunpack.c.l.b16 %v304
    %v1847 = vunpack.c.h.b16 %v304
    %v1848 = vunpack.c.l.b16 %v305
    %v1849 = vunpack.c.h.b16 %v305
    %v1850 = vunpack.c.l.b16 %v306
    %v1851 = vunpack.c.h.b16 %v306
    %v1852 = vunpack.c.l.b16 %v307
    %v1853 = vunpack.c.h.b16 %v307
    %v1854 = vunpack.c.l.b16 %v308
    %v1855 = vunpack.c.h.b16 %v308
    %v1856 = vunpack.c.l.b16 %v309
    %v1857 = vunpack.c.h.b16 %v309
    %v1858 = vunpack.c.l.b16 %v310
    %v1859 = vunpack.c.h.b16 %v310
    %v1860 = vunpack.c.l.b16 %v311
    %v1861 = vunpack.c.h.b16 %v311
    %v1862 = vunpack.c.l.b16 %v312
    %v1863 = vunpack.c.h.b16 %v312
    %v1864 = vunpack.c.l.b16 %v313
    %v1865 = vunpack.c.h.b16 %v313
    %v1866 = vunpack.c.l.b16 %v314
    %v1867 = vunpack.c.h.b16 %v314
    %v1868 = vunpack.c.l.b16 %v315
    %v1869 = vunpack.c.h.b16 %v315
    %v1870 = vunpack.c.l.b16 %v316
    %v1871 = vunpack.c.h.b16 %v316
    %v1872 = vunpack.c.l.b16 %v317
    %v1873 = vunpack.c.h.b16 %v317
    %v1874 = vunpack.c.l.b16 %v318
    %v1875 = vunpack.c.h.b16 %v318
    %v1876 = vunpack.c.l.b16 %v319
    %v1877 = vunpack.c.h.b16 %v319
    %v1878 = vunpack.c.l.b16 %v320
    %v1879 = vunpack.c.h.b16 %v320
    %v1880 = vunpack.c.l.b16 %v321
    %v1881 = vunpack.c.h.b16 %v321
    %v1882 = vunpack.c.l.b16 %v322
    %v1883 = vunpack.c.h.b16 %v322
    %v1884 = vunpack.c.l.b16 %v323
    %v1885 = vunpack.c.h.b16 %v323
    %v1886 = vunpack.c.l.b16 %v324
    %v1887 = vunpack.c.h.b16 %v324
    %v1888 = vunpack.c.l.b16 %v325
    %v1889 = vunpack.c.h.b16 %v325
    %v1890 = vunpack.c.l.b16 %v326
    %v1891 = vunpack.c.h.b16 %v326
    %v1892 = vunpack.c.l.b16 %v327
    %v1893 = vunpack.c.h.b16 %v327
    %v1894 = vunpack.c.l.b16 %v328
    %v1895 = vunpack.c.h.b16 %v328
    %v1896 = vunpack.c.l.b16 %v329
    %v1897 = vunpack.c.h.b16 %v329
    %v1898 = vunpack.c.l.b16 %v330
    %v1899 = vunpack.c.h.b16 %v330
    %v1900 = vunpack.c.l.b16 %v331
    %v1901 = vunpack.c.h.b16 %v331
    %v1902 = vunpack.c.l.b16 %v332
    %v1903 = vunpack.c.h.b16 %v332
    %v1904 = vunpack.c.l.b16 %v333
    %v1905 = vunpack.c.h.b16 %v333
    %v1906 = vunpack.c.l.b16 %v334
    %v1907 = vunpack.c.h.b16 %v334
    %v1908 = vunpack.c.l.b16 %v335
    %v1909 = vunpack.c.h.b16 %v335
    %v1910 = vunpack.c.l.b16 %v336
    %v1911 = vunpack.c.h.b16 %v336
    %v1912 = vunpack.c.l.b16 %v337
    %v1913 = vunpack.c.h.b16 %v337
    %v1914 = vunpack.c.l.b16 %v338
    %v1915 = vunpack.c.h.b16 %v338
    %v1916 = vunpack.c.l.b16 %v339
    %v1917 = vunpack.c.h.b16 %v339
    %v1918 = vunpack.c.l.b16 %v340
    %v1919 = vunpack.c.h.b16 %v340
    %v1920 = vunpack.c.l.b16 %v341
    %v1921 = vunpack.c.h.b16 %v341
    %v1922 = vunpack.c.l.b16 %v342
    %v1923 = vunpack.c.h.b16 %v342
    %v1924 = vunpack.c.l.b16 %v343
    %v1925 = vunpack.c.h.b16 %v343
    %v1926 = vunpack.c.l.b16 %v344
    %v1927 = vunpack.c.h.b16 %v344
    %v1928 = vunpack.c.l.b16 %v345
    %v1929 = vunpack.c.h.b16 %v345
    %v1930 = vunpack.c.l.b16 %v346
    %v1931 = vunpack.c.h.b16 %v346
    %v1932 = vunpack.c.l.b16 %v347
    %v1933 = vunpack.c.h.b16 %v347
    %v1934 = vunpack.c.l.b16 %v348
    %v1935 = vunpack.c.h.b16 %v348
    %v1936 = vunpack.c.l.b16 %v349
    %v1937 = vunpack.c.h.b16 %v349
    %v1938 = vunpack.c.l.b16 %v350
    %v1939 = vunpack.c.h.b16 %v350
    %v1940 = vunpack.c.l.b16 %v351
    %v1941 = vunpack.c.h.b16 %v351
    %v1942 = vpack.c.b16 %v1816, %v1814
    %v1943 = vpack.c.b16 %v1817, %v1815
    %v1944 = vpack.c.b16 %v1820, %v1818
    %v1945 = vpack.c.b16 %v1821, %v1819
    %v1946 = vpack.c.b16 %v1824, %v1822
    %v1947 = vpack.c.b16 %v1825, %v1823
    %v1948 = vpack.c.b16 %v1828, %v1826
    %v1949 = vpack.c.b16 %v1829, %v1827
    %v1950 = vpack.c.b16 %v1832, %v1830
    %v1951 = vpack.c.b16 %v1833, %v1831
    %v1952 = vpack.c.b16 %v1836, %v1834
    %v1953 = vpack.c.b16 %v1837, %v1835
    %v1954 = vpack.c.b16 %v1840, %v1838
    %v1955 = vpack.c.b16 %v1841, %v1839
    %v1956 = vpack.c.b16 %v1844, %v1842
    %v1957 = vpack.c.b16 %v1845, %v1843
    %v1958 = vpack.c.b16 %v1848, %v1846
    %v1959 = vpack.c.b16 %v1849, %v1847
    %v1960 = vpack.c.b16 %v1852, %v1850
    %v1961 = vpack.c.b16 %v1853, %v1851
    %v1962 = vpack.c.b16 %v1856, %v1854
    %v1963 = vpack.c.b16 %v1857, %v1855
    %v1964 = vpack.c.b16 %v1860, %v1858
    %v1965 = vpack.c.b16 %v1861, %v1859
    %v1966 = vpack.c.b16 %v1864, %v1862
    %v1967 = vpack.c.b16 %v1865, %v1863
    %v1968 = vpack.c.b16 %v1868, %v1866
    %v1969 = vpack.c.b16 %v1869, %v1867
    %v1970 = vpack.c.b16 %v1872, %v1870
    %v1971 = vpack.c.b16 %v1873, %v1871
    %v1972 = vpack.c.b16 %v1876, %v1874
    %v1973 = vpack.c.b16 %v1877, %v1875
    %v1974 = vpack.c.b16 %v1880, %v1878
    %v1975 = vpack.c.b16 %v1881, %v1879
    %v1976 = vpack.c.b16 %v1884, %v1882
    %v1977 = vpack.c.b16 %v1885, %v1883
    %v1978 = vpack.c.b16 %v1888, %v1886
    %v1979 = vpack.c.b16 %v1889, %v1887
    %v1980 = vpack.c.b16 %v1892, %v1890
    %v1981 = vpack.c.b16 %v1893, %v1891
    %v1982 = vpack.c.b16 %v1896, %v1894
    %v1983 = vpack.c.b16 %v1897, %v1895
    %v1984 = vpack.c.b16 %v1900, %v1898
    %v1985 = vpack.c.b16 %v1901, %v1899
    %v1986 = vpack.c.b16 %v1904, %v1902
    %v1987 = vpack.c.b16 %v1905, %v1903
    %v1988 = vpack.c.b16 %v1908, %v1906
    %v1989 = vpack.c.b16 %v1909, %v1907
    %v1990 = vpack.c.b16 %v1912, %v1910
    %v1991 = vpack.c.b16 %v1913, %v1911
    %v1992 = vpack.c.b16 %v1916, %v1914
    %v1993 = vpack.c.b16 %v1917, %v1915
    %v1994 = vpack.c.b16 %v1920, %v1918
    %v1995 = vpack.c.b16 %v1921, %v1919
    %v1996 = vpack.c.b16 %v1924, %v1922
    %v1997 = vpack.c.b16 %v1925, %v1923
    %v1998 = vpack.c.b16 %v1928, %v1926
    %v1999 = vpack.c.b16 %v1929, %v1927
    %v2000 = vpack.c.b16 %v1932, %v1930
    %v2001 = vpack.c.b16 %v1933, %v1931
    %v2002 = vpack.c.b16 %v1936, %v1934
    %v2003 = vpack.c.b16 %v1937, %v1935
    %v2004 = vpack.c.b16 %v1940, %v1938
    %v2005 = vpack.c.b16 %v1941, %v1939
    %2070 = vmatprep.subr.bf16.mxu0 %v1957
    %2071 = vmatpush1.bf16.msra.mxu0 %v1956
    %2072 = vmatprep.subr.bf16.mxu0 %v1955
    %2073 = vmatpush1.bf16.msra.mxu0 %v1954
    %2074 = vmatprep.subr.bf16.mxu0 %v1953
    %2075 = vmatpush1.bf16.msra.mxu0 %v1952
    %2076 = vmatprep.subr.bf16.mxu0 %v1951
    %2077 = vmatpush1.bf16.msra.mxu0 %v1950
    %2078 = vmatprep.subr.bf16.mxu0 %v1949
    %2079 = vmatpush1.bf16.msra.mxu0 %v1948
    %2080 = vmatprep.subr.bf16.mxu0 %v1947
    %2081 = vmatpush1.bf16.msra.mxu0 %v1946
    %2082 = vmatprep.subr.bf16.mxu0 %v1945
    %2083 = vmatpush1.bf16.msra.mxu0 %v1944
    %2084 = vmatprep.subr.bf16.mxu0 %v1943
    %2085 = vmatpush1.bf16.msra.mxu0 %v1942
    %2086 = vmatprep.subr.bf16.mxu0 %v1973
    %2087 = vmatpush2.bf16.msra.mxu0 %v1972
    %2088 = vmatprep.subr.bf16.mxu0 %v1971
    %2089 = vmatpush2.bf16.msra.mxu0 %v1970
    %2090 = vmatprep.subr.bf16.mxu0 %v1969
    %2091 = vmatpush2.bf16.msra.mxu0 %v1968
    %2092 = vmatprep.subr.bf16.mxu0 %v1967
    %2093 = vmatpush2.bf16.msra.mxu0 %v1966
    %2094 = vmatprep.subr.bf16.mxu0 %v1965
    %2095 = vmatpush2.bf16.msra.mxu0 %v1964
    %2096 = vmatprep.subr.bf16.mxu0 %v1963
    %2097 = vmatpush2.bf16.msra.mxu0 %v1962
    %2098 = vmatprep.subr.bf16.mxu0 %v1961
    %2099 = vmatpush2.bf16.msra.mxu0 %v1960
    %2100 = vmatprep.subr.bf16.mxu0 %v1959
    %2101 = vmatpush2.bf16.msra.mxu0 %v1958
    %2102 = vmatprep.mubr.bf16.mxu0 %v81
    %2103 = vmatmul.mubr.bf16.gmra.mxu0 %v80
    %v2104 = vpop.f32.mrf.mxu0
    %v2105 = vadd.f32 0.0, %v2104
    %v2106 = vpop.f32.mrf.mxu0
    %v2107 = vadd.f32 0.0, %v2106
    %v2108 = vpop.f32.mrf.mxu0
    %v2109 = vpop.f32.mrf.mxu0
    %2110 = vdwg.mxu0
    %2111 = vmatprep.subr.bf16.mxu0 %v1989
    %2112 = vmatpush1.bf16.msra.mxu0 %v1988
    %2113 = vmatprep.subr.bf16.mxu0 %v1987
    %2114 = vmatpush1.bf16.msra.mxu0 %v1986
    %2115 = vmatprep.subr.bf16.mxu0 %v1985
    %2116 = vmatpush1.bf16.msra.mxu0 %v1984
    %2117 = vmatprep.subr.bf16.mxu0 %v1983
    %2118 = vmatpush1.bf16.msra.mxu0 %v1982
    %2119 = vmatprep.subr.bf16.mxu0 %v1981
    %2120 = vmatpush1.bf16.msra.mxu0 %v1980
    %2121 = vmatprep.subr.bf16.mxu0 %v1979
    %2122 = vmatpush1.bf16.msra.mxu0 %v1978
    %2123 = vmatprep.subr.bf16.mxu0 %v1977
    %2124 = vmatpush1.bf16.msra.mxu0 %v1976
    %2125 = vmatprep.subr.bf16.mxu0 %v1975
    %2126 = vmatpush1.bf16.msra.mxu0 %v1974
    %2127 = vmatprep.subr.bf16.mxu0 %v2005
    %2128 = vmatpush2.bf16.msra.mxu0 %v2004
    %2129 = vmatprep.subr.bf16.mxu0 %v2003
    %2130 = vmatpush2.bf16.msra.mxu0 %v2002
    %2131 = vmatprep.subr.bf16.mxu0 %v2001
    %2132 = vmatpush2.bf16.msra.mxu0 %v2000
    %2133 = vmatprep.subr.bf16.mxu0 %v1999
    %2134 = vmatpush2.bf16.msra.mxu0 %v1998
    %2135 = vmatprep.subr.bf16.mxu0 %v1997
    %2136 = vmatpush2.bf16.msra.mxu0 %v1996
    %2137 = vmatprep.subr.bf16.mxu0 %v1995
    %2138 = vmatpush2.bf16.msra.mxu0 %v1994
    %2139 = vmatprep.subr.bf16.mxu0 %v1993
    %2140 = vmatpush2.bf16.msra.mxu0 %v1992
    %2141 = vmatprep.subr.bf16.mxu0 %v1991
    %2142 = vmatpush2.bf16.msra.mxu0 %v1990
    %2143 = vmatprep.mubr.bf16.mxu0 %v83
    %2144 = vmatmul.mubr.bf16.gmra.mxu0 %v82
    %v2145 = vpop.f32.mrf.mxu0
    %v2146 = vadd.f32 %v2105, %v2145
    %v2147 = vpop.f32.mrf.mxu0
    %v2148 = vadd.f32 %v2107, %v2147
    %v2149 = vpop.f32.mrf.mxu0
    %v2150 = vpop.f32.mrf.mxu0
    %2151 = vdwg.mxu0
    %v2216 = vunpack.c.l.b16 %v352
    %v2217 = vunpack.c.h.b16 %v352
    %v2218 = vunpack.c.l.b16 %v353
    %v2219 = vunpack.c.h.b16 %v353
    %v2220 = vunpack.c.l.b16 %v354
    %v2221 = vunpack.c.h.b16 %v354
    %v2222 = vunpack.c.l.b16 %v355
    %v2223 = vunpack.c.h.b16 %v355
    %v2224 = vunpack.c.l.b16 %v356
    %v2225 = vunpack.c.h.b16 %v356
    %v2226 = vunpack.c.l.b16 %v357
    %v2227 = vunpack.c.h.b16 %v357
    %v2228 = vunpack.c.l.b16 %v358
    %v2229 = vunpack.c.h.b16 %v358
    %v2230 = vunpack.c.l.b16 %v359
    %v2231 = vunpack.c.h.b16 %v359
    %v2232 = vunpack.c.l.b16 %v360
    %v2233 = vunpack.c.h.b16 %v360
    %v2234 = vunpack.c.l.b16 %v361
    %v2235 = vunpack.c.h.b16 %v361
    %v2236 = vunpack.c.l.b16 %v362
    %v2237 = vunpack.c.h.b16 %v362
    %v2238 = vunpack.c.l.b16 %v363
    %v2239 = vunpack.c.h.b16 %v363
    %v2240 = vunpack.c.l.b16 %v364
    %v2241 = vunpack.c.h.b16 %v364
    %v2242 = vunpack.c.l.b16 %v365
    %v2243 = vunpack.c.h.b16 %v365
    %v2244 = vunpack.c.l.b16 %v366
    %v2245 = vunpack.c.h.b16 %v366
    %v2246 = vunpack.c.l.b16 %v367
    %v2247 = vunpack.c.h.b16 %v367
    %v2248 = vunpack.c.l.b16 %v368
    %v2249 = vunpack.c.h.b16 %v368
    %v2250 = vunpack.c.l.b16 %v369
    %v2251 = vunpack.c.h.b16 %v369
    %v2252 = vunpack.c.l.b16 %v370
    %v2253 = vunpack.c.h.b16 %v370
    %v2254 = vunpack.c.l.b16 %v371
    %v2255 = vunpack.c.h.b16 %v371
    %v2256 = vunpack.c.l.b16 %v372
    %v2257 = vunpack.c.h.b16 %v372
    %v2258 = vunpack.c.l.b16 %v373
    %v2259 = vunpack.c.h.b16 %v373
    %v2260 = vunpack.c.l.b16 %v374
    %v2261 = vunpack.c.h.b16 %v374
    %v2262 = vunpack.c.l.b16 %v375
    %v2263 = vunpack.c.h.b16 %v375
    %v2264 = vunpack.c.l.b16 %v376
    %v2265 = vunpack.c.h.b16 %v376
    %v2266 = vunpack.c.l.b16 %v377
    %v2267 = vunpack.c.h.b16 %v377
    %v2268 = vunpack.c.l.b16 %v378
    %v2269 = vunpack.c.h.b16 %v378
    %v2270 = vunpack.c.l.b16 %v379
    %v2271 = vunpack.c.h.b16 %v379
    %v2272 = vunpack.c.l.b16 %v380
    %v2273 = vunpack.c.h.b16 %v380
    %v2274 = vunpack.c.l.b16 %v381
    %v2275 = vunpack.c.h.b16 %v381
    %v2276 = vunpack.c.l.b16 %v382
    %v2277 = vunpack.c.h.b16 %v382
    %v2278 = vunpack.c.l.b16 %v383
    %v2279 = vunpack.c.h.b16 %v383
    %v2280 = vunpack.c.l.b16 %v384
    %v2281 = vunpack.c.h.b16 %v384
    %v2282 = vunpack.c.l.b16 %v385
    %v2283 = vunpack.c.h.b16 %v385
    %v2284 = vunpack.c.l.b16 %v386
    %v2285 = vunpack.c.h.b16 %v386
    %v2286 = vunpack.c.l.b16 %v387
    %v2287 = vunpack.c.h.b16 %v387
    %v2288 = vunpack.c.l.b16 %v388
    %v2289 = vunpack.c.h.b16 %v388
    %v2290 = vunpack.c.l.b16 %v389
    %v2291 = vunpack.c.h.b16 %v389
    %v2292 = vunpack.c.l.b16 %v390
    %v2293 = vunpack.c.h.b16 %v390
    %v2294 = vunpack.c.l.b16 %v391
    %v2295 = vunpack.c.h.b16 %v391
    %v2296 = vunpack.c.l.b16 %v392
    %v2297 = vunpack.c.h.b16 %v392
    %v2298 = vunpack.c.l.b16 %v393
    %v2299 = vunpack.c.h.b16 %v393
    %v2300 = vunpack.c.l.b16 %v394
    %v2301 = vunpack.c.h.b16 %v394
    %v2302 = vunpack.c.l.b16 %v395
    %v2303 = vunpack.c.h.b16 %v395
    %v2304 = vunpack.c.l.b16 %v396
    %v2305 = vunpack.c.h.b16 %v396
    %v2306 = vunpack.c.l.b16 %v397
    %v2307 = vunpack.c.h.b16 %v397
    %v2308 = vunpack.c.l.b16 %v398
    %v2309 = vunpack.c.h.b16 %v398
    %v2310 = vunpack.c.l.b16 %v399
    %v2311 = vunpack.c.h.b16 %v399
    %v2312 = vunpack.c.l.b16 %v400
    %v2313 = vunpack.c.h.b16 %v400
    %v2314 = vunpack.c.l.b16 %v401
    %v2315 = vunpack.c.h.b16 %v401
    %v2316 = vunpack.c.l.b16 %v402
    %v2317 = vunpack.c.h.b16 %v402
    %v2318 = vunpack.c.l.b16 %v403
    %v2319 = vunpack.c.h.b16 %v403
    %v2320 = vunpack.c.l.b16 %v404
    %v2321 = vunpack.c.h.b16 %v404
    %v2322 = vunpack.c.l.b16 %v405
    %v2323 = vunpack.c.h.b16 %v405
    %v2324 = vunpack.c.l.b16 %v406
    %v2325 = vunpack.c.h.b16 %v406
    %v2326 = vunpack.c.l.b16 %v407
    %v2327 = vunpack.c.h.b16 %v407
    %v2328 = vunpack.c.l.b16 %v408
    %v2329 = vunpack.c.h.b16 %v408
    %v2330 = vunpack.c.l.b16 %v409
    %v2331 = vunpack.c.h.b16 %v409
    %v2332 = vunpack.c.l.b16 %v410
    %v2333 = vunpack.c.h.b16 %v410
    %v2334 = vunpack.c.l.b16 %v411
    %v2335 = vunpack.c.h.b16 %v411
    %v2336 = vunpack.c.l.b16 %v412
    %v2337 = vunpack.c.h.b16 %v412
    %v2338 = vunpack.c.l.b16 %v413
    %v2339 = vunpack.c.h.b16 %v413
    %v2340 = vunpack.c.l.b16 %v414
    %v2341 = vunpack.c.h.b16 %v414
    %v2342 = vunpack.c.l.b16 %v415
    %v2343 = vunpack.c.h.b16 %v415
    %v2344 = vpack.c.b16 %v2218, %v2216
    %v2345 = vpack.c.b16 %v2219, %v2217
    %v2346 = vpack.c.b16 %v2222, %v2220
    %v2347 = vpack.c.b16 %v2223, %v2221
    %v2348 = vpack.c.b16 %v2226, %v2224
    %v2349 = vpack.c.b16 %v2227, %v2225
    %v2350 = vpack.c.b16 %v2230, %v2228
    %v2351 = vpack.c.b16 %v2231, %v2229
    %v2352 = vpack.c.b16 %v2234, %v2232
    %v2353 = vpack.c.b16 %v2235, %v2233
    %v2354 = vpack.c.b16 %v2238, %v2236
    %v2355 = vpack.c.b16 %v2239, %v2237
    %v2356 = vpack.c.b16 %v2242, %v2240
    %v2357 = vpack.c.b16 %v2243, %v2241
    %v2358 = vpack.c.b16 %v2246, %v2244
    %v2359 = vpack.c.b16 %v2247, %v2245
    %v2360 = vpack.c.b16 %v2250, %v2248
    %v2361 = vpack.c.b16 %v2251, %v2249
    %v2362 = vpack.c.b16 %v2254, %v2252
    %v2363 = vpack.c.b16 %v2255, %v2253
    %v2364 = vpack.c.b16 %v2258, %v2256
    %v2365 = vpack.c.b16 %v2259, %v2257
    %v2366 = vpack.c.b16 %v2262, %v2260
    %v2367 = vpack.c.b16 %v2263, %v2261
    %v2368 = vpack.c.b16 %v2266, %v2264
    %v2369 = vpack.c.b16 %v2267, %v2265
    %v2370 = vpack.c.b16 %v2270, %v2268
    %v2371 = vpack.c.b16 %v2271, %v2269
    %v2372 = vpack.c.b16 %v2274, %v2272
    %v2373 = vpack.c.b16 %v2275, %v2273
    %v2374 = vpack.c.b16 %v2278, %v2276
    %v2375 = vpack.c.b16 %v2279, %v2277
    %v2376 = vpack.c.b16 %v2282, %v2280
    %v2377 = vpack.c.b16 %v2283, %v2281
    %v2378 = vpack.c.b16 %v2286, %v2284
    %v2379 = vpack.c.b16 %v2287, %v2285
    %v2380 = vpack.c.b16 %v2290, %v2288
    %v2381 = vpack.c.b16 %v2291, %v2289
    %v2382 = vpack.c.b16 %v2294, %v2292
    %v2383 = vpack.c.b16 %v2295, %v2293
    %v2384 = vpack.c.b16 %v2298, %v2296
    %v2385 = vpack.c.b16 %v2299, %v2297
    %v2386 = vpack.c.b16 %v2302, %v2300
    %v2387 = vpack.c.b16 %v2303, %v2301
    %v2388 = vpack.c.b16 %v2306, %v2304
    %v2389 = vpack.c.b16 %v2307, %v2305
    %v2390 = vpack.c.b16 %v2310, %v2308
    %v2391 = vpack.c.b16 %v2311, %v2309
    %v2392 = vpack.c.b16 %v2314, %v2312
    %v2393 = vpack.c.b16 %v2315, %v2313
    %v2394 = vpack.c.b16 %v2318, %v2316
    %v2395 = vpack.c.b16 %v2319, %v2317
    %v2396 = vpack.c.b16 %v2322, %v2320
    %v2397 = vpack.c.b16 %v2323, %v2321
    %v2398 = vpack.c.b16 %v2326, %v2324
    %v2399 = vpack.c.b16 %v2327, %v2325
    %v2400 = vpack.c.b16 %v2330, %v2328
    %v2401 = vpack.c.b16 %v2331, %v2329
    %v2402 = vpack.c.b16 %v2334, %v2332
    %v2403 = vpack.c.b16 %v2335, %v2333
    %v2404 = vpack.c.b16 %v2338, %v2336
    %v2405 = vpack.c.b16 %v2339, %v2337
    %v2406 = vpack.c.b16 %v2342, %v2340
    %v2407 = vpack.c.b16 %v2343, %v2341
    %2472 = vmatprep.subr.bf16.mxu0 %v2359
    %2473 = vmatpush1.bf16.msra.mxu0 %v2358
    %2474 = vmatprep.subr.bf16.mxu0 %v2357
    %2475 = vmatpush1.bf16.msra.mxu0 %v2356
    %2476 = vmatprep.subr.bf16.mxu0 %v2355
    %2477 = vmatpush1.bf16.msra.mxu0 %v2354
    %2478 = vmatprep.subr.bf16.mxu0 %v2353
    %2479 = vmatpush1.bf16.msra.mxu0 %v2352
    %2480 = vmatprep.subr.bf16.mxu0 %v2351
    %2481 = vmatpush1.bf16.msra.mxu0 %v2350
    %2482 = vmatprep.subr.bf16.mxu0 %v2349
    %2483 = vmatpush1.bf16.msra.mxu0 %v2348
    %2484 = vmatprep.subr.bf16.mxu0 %v2347
    %2485 = vmatpush1.bf16.msra.mxu0 %v2346
    %2486 = vmatprep.subr.bf16.mxu0 %v2345
    %2487 = vmatpush1.bf16.msra.mxu0 %v2344
    %2488 = vmatprep.subr.bf16.mxu0 %v2375
    %2489 = vmatpush2.bf16.msra.mxu0 %v2374
    %2490 = vmatprep.subr.bf16.mxu0 %v2373
    %2491 = vmatpush2.bf16.msra.mxu0 %v2372
    %2492 = vmatprep.subr.bf16.mxu0 %v2371
    %2493 = vmatpush2.bf16.msra.mxu0 %v2370
    %2494 = vmatprep.subr.bf16.mxu0 %v2369
    %2495 = vmatpush2.bf16.msra.mxu0 %v2368
    %2496 = vmatprep.subr.bf16.mxu0 %v2367
    %2497 = vmatpush2.bf16.msra.mxu0 %v2366
    %2498 = vmatprep.subr.bf16.mxu0 %v2365
    %2499 = vmatpush2.bf16.msra.mxu0 %v2364
    %2500 = vmatprep.subr.bf16.mxu0 %v2363
    %2501 = vmatpush2.bf16.msra.mxu0 %v2362
    %2502 = vmatprep.subr.bf16.mxu0 %v2361
    %2503 = vmatpush2.bf16.msra.mxu0 %v2360
    %2504 = vmatprep.mubr.bf16.mxu0 %v85
    %2505 = vmatmul.mubr.bf16.gmra.mxu0 %v84
    %v2506 = vpop.f32.mrf.mxu0
    %v2507 = vadd.f32 0.0, %v2506
    %v2508 = vpop.f32.mrf.mxu0
    %v2509 = vadd.f32 0.0, %v2508
    %v2510 = vpop.f32.mrf.mxu0
    %v2511 = vpop.f32.mrf.mxu0
    %2512 = vdwg.mxu0
    %2513 = vmatprep.subr.bf16.mxu0 %v2391
    %2514 = vmatpush1.bf16.msra.mxu0 %v2390
    %2515 = vmatprep.subr.bf16.mxu0 %v2389
    %2516 = vmatpush1.bf16.msra.mxu0 %v2388
    %2517 = vmatprep.subr.bf16.mxu0 %v2387
    %2518 = vmatpush1.bf16.msra.mxu0 %v2386
    %2519 = vmatprep.subr.bf16.mxu0 %v2385
    %2520 = vmatpush1.bf16.msra.mxu0 %v2384
    %2521 = vmatprep.subr.bf16.mxu0 %v2383
    %2522 = vmatpush1.bf16.msra.mxu0 %v2382
    %2523 = vmatprep.subr.bf16.mxu0 %v2381
    %2524 = vmatpush1.bf16.msra.mxu0 %v2380
    %2525 = vmatprep.subr.bf16.mxu0 %v2379
    %2526 = vmatpush1.bf16.msra.mxu0 %v2378
    %2527 = vmatprep.subr.bf16.mxu0 %v2377
    %2528 = vmatpush1.bf16.msra.mxu0 %v2376
    %2529 = vmatprep.subr.bf16.mxu0 %v2407
    %2530 = vmatpush2.bf16.msra.mxu0 %v2406
    %2531 = vmatprep.subr.bf16.mxu0 %v2405
    %2532 = vmatpush2.bf16.msra.mxu0 %v2404
    %2533 = vmatprep.subr.bf16.mxu0 %v2403
    %2534 = vmatpush2.bf16.msra.mxu0 %v2402
    %2535 = vmatprep.subr.bf16.mxu0 %v2401
    %2536 = vmatpush2.bf16.msra.mxu0 %v2400
    %2537 = vmatprep.subr.bf16.mxu0 %v2399
    %2538 = vmatpush2.bf16.msra.mxu0 %v2398
    %2539 = vmatprep.subr.bf16.mxu0 %v2397
    %2540 = vmatpush2.bf16.msra.mxu0 %v2396
    %2541 = vmatprep.subr.bf16.mxu0 %v2395
    %2542 = vmatpush2.bf16.msra.mxu0 %v2394
    %2543 = vmatprep.subr.bf16.mxu0 %v2393
    %2544 = vmatpush2.bf16.msra.mxu0 %v2392
    %2545 = vmatprep.mubr.bf16.mxu0 %v87
    %2546 = vmatmul.mubr.bf16.gmra.mxu0 %v86
    %v2547 = vpop.f32.mrf.mxu0
    %v2548 = vadd.f32 %v2507, %v2547
    %v2549 = vpop.f32.mrf.mxu0
    %v2550 = vadd.f32 %v2509, %v2549
    %v2551 = vpop.f32.mrf.mxu0
    %v2552 = vpop.f32.mrf.mxu0
    %2553 = vdwg.mxu0
    %v2618 = vunpack.c.l.b16 %v416
    %v2619 = vunpack.c.h.b16 %v416
    %v2620 = vunpack.c.l.b16 %v417
    %v2621 = vunpack.c.h.b16 %v417
    %v2622 = vunpack.c.l.b16 %v418
    %v2623 = vunpack.c.h.b16 %v418
    %v2624 = vunpack.c.l.b16 %v419
    %v2625 = vunpack.c.h.b16 %v419
    %v2626 = vunpack.c.l.b16 %v420
    %v2627 = vunpack.c.h.b16 %v420
    %v2628 = vunpack.c.l.b16 %v421
    %v2629 = vunpack.c.h.b16 %v421
    %v2630 = vunpack.c.l.b16 %v422
    %v2631 = vunpack.c.h.b16 %v422
    %v2632 = vunpack.c.l.b16 %v423
    %v2633 = vunpack.c.h.b16 %v423
    %v2634 = vunpack.c.l.b16 %v424
    %v2635 = vunpack.c.h.b16 %v424
    %v2636 = vunpack.c.l.b16 %v425
    %v2637 = vunpack.c.h.b16 %v425
    %v2638 = vunpack.c.l.b16 %v426
    %v2639 = vunpack.c.h.b16 %v426
    %v2640 = vunpack.c.l.b16 %v427
    %v2641 = vunpack.c.h.b16 %v427
    %v2642 = vunpack.c.l.b16 %v428
    %v2643 = vunpack.c.h.b16 %v428
    %v2644 = vunpack.c.l.b16 %v429
    %v2645 = vunpack.c.h.b16 %v429
    %v2646 = vunpack.c.l.b16 %v430
    %v2647 = vunpack.c.h.b16 %v430
    %v2648 = vunpack.c.l.b16 %v431
    %v2649 = vunpack.c.h.b16 %v431
    %v2650 = vunpack.c.l.b16 %v432
    %v2651 = vunpack.c.h.b16 %v432
    %v2652 = vunpack.c.l.b16 %v433
    %v2653 = vunpack.c.h.b16 %v433
    %v2654 = vunpack.c.l.b16 %v434
    %v2655 = vunpack.c.h.b16 %v434
    %v2656 = vunpack.c.l.b16 %v435
    %v2657 = vunpack.c.h.b16 %v435
    %v2658 = vunpack.c.l.b16 %v436
    %v2659 = vunpack.c.h.b16 %v436
    %v2660 = vunpack.c.l.b16 %v437
    %v2661 = vunpack.c.h.b16 %v437
    %v2662 = vunpack.c.l.b16 %v438
    %v2663 = vunpack.c.h.b16 %v438
    %v2664 = vunpack.c.l.b16 %v439
    %v2665 = vunpack.c.h.b16 %v439
    %v2666 = vunpack.c.l.b16 %v440
    %v2667 = vunpack.c.h.b16 %v440
    %v2668 = vunpack.c.l.b16 %v441
    %v2669 = vunpack.c.h.b16 %v441
    %v2670 = vunpack.c.l.b16 %v442
    %v2671 = vunpack.c.h.b16 %v442
    %v2672 = vunpack.c.l.b16 %v443
    %v2673 = vunpack.c.h.b16 %v443
    %v2674 = vunpack.c.l.b16 %v444
    %v2675 = vunpack.c.h.b16 %v444
    %v2676 = vunpack.c.l.b16 %v445
    %v2677 = vunpack.c.h.b16 %v445
    %v2678 = vunpack.c.l.b16 %v446
    %v2679 = vunpack.c.h.b16 %v446
    %v2680 = vunpack.c.l.b16 %v447
    %v2681 = vunpack.c.h.b16 %v447
    %v2682 = vunpack.c.l.b16 %v448
    %v2683 = vunpack.c.h.b16 %v448
    %v2684 = vunpack.c.l.b16 %v449
    %v2685 = vunpack.c.h.b16 %v449
    %v2686 = vunpack.c.l.b16 %v450
    %v2687 = vunpack.c.h.b16 %v450
    %v2688 = vunpack.c.l.b16 %v451
    %v2689 = vunpack.c.h.b16 %v451
    %v2690 = vunpack.c.l.b16 %v452
    %v2691 = vunpack.c.h.b16 %v452
    %v2692 = vunpack.c.l.b16 %v453
    %v2693 = vunpack.c.h.b16 %v453
    %v2694 = vunpack.c.l.b16 %v454
    %v2695 = vunpack.c.h.b16 %v454
    %v2696 = vunpack.c.l.b16 %v455
    %v2697 = vunpack.c.h.b16 %v455
    %v2698 = vunpack.c.l.b16 %v456
    %v2699 = vunpack.c.h.b16 %v456
    %v2700 = vunpack.c.l.b16 %v457
    %v2701 = vunpack.c.h.b16 %v457
    %v2702 = vunpack.c.l.b16 %v458
    %v2703 = vunpack.c.h.b16 %v458
    %v2704 = vunpack.c.l.b16 %v459
    %v2705 = vunpack.c.h.b16 %v459
    %v2706 = vunpack.c.l.b16 %v460
    %v2707 = vunpack.c.h.b16 %v460
    %v2708 = vunpack.c.l.b16 %v461
    %v2709 = vunpack.c.h.b16 %v461
    %v2710 = vunpack.c.l.b16 %v462
    %v2711 = vunpack.c.h.b16 %v462
    %v2712 = vunpack.c.l.b16 %v463
    %v2713 = vunpack.c.h.b16 %v463
    %v2714 = vunpack.c.l.b16 %v464
    %v2715 = vunpack.c.h.b16 %v464
    %v2716 = vunpack.c.l.b16 %v465
    %v2717 = vunpack.c.h.b16 %v465
    %v2718 = vunpack.c.l.b16 %v466
    %v2719 = vunpack.c.h.b16 %v466
    %v2720 = vunpack.c.l.b16 %v467
    %v2721 = vunpack.c.h.b16 %v467
    %v2722 = vunpack.c.l.b16 %v468
    %v2723 = vunpack.c.h.b16 %v468
    %v2724 = vunpack.c.l.b16 %v469
    %v2725 = vunpack.c.h.b16 %v469
    %v2726 = vunpack.c.l.b16 %v470
    %v2727 = vunpack.c.h.b16 %v470
    %v2728 = vunpack.c.l.b16 %v471
    %v2729 = vunpack.c.h.b16 %v471
    %v2730 = vunpack.c.l.b16 %v472
    %v2731 = vunpack.c.h.b16 %v472
    %v2732 = vunpack.c.l.b16 %v473
    %v2733 = vunpack.c.h.b16 %v473
    %v2734 = vunpack.c.l.b16 %v474
    %v2735 = vunpack.c.h.b16 %v474
    %v2736 = vunpack.c.l.b16 %v475
    %v2737 = vunpack.c.h.b16 %v475
    %v2738 = vunpack.c.l.b16 %v476
    %v2739 = vunpack.c.h.b16 %v476
    %v2740 = vunpack.c.l.b16 %v477
    %v2741 = vunpack.c.h.b16 %v477
    %v2742 = vunpack.c.l.b16 %v478
    %v2743 = vunpack.c.h.b16 %v478
    %v2744 = vunpack.c.l.b16 %v479
    %v2745 = vunpack.c.h.b16 %v479
    %v2746 = vpack.c.b16 %v2620, %v2618
    %v2747 = vpack.c.b16 %v2621, %v2619
    %v2748 = vpack.c.b16 %v2624, %v2622
    %v2749 = vpack.c.b16 %v2625, %v2623
    %v2750 = vpack.c.b16 %v2628, %v2626
    %v2751 = vpack.c.b16 %v2629, %v2627
    %v2752 = vpack.c.b16 %v2632, %v2630
    %v2753 = vpack.c.b16 %v2633, %v2631
    %v2754 = vpack.c.b16 %v2636, %v2634
    %v2755 = vpack.c.b16 %v2637, %v2635
    %v2756 = vpack.c.b16 %v2640, %v2638
    %v2757 = vpack.c.b16 %v2641, %v2639
    %v2758 = vpack.c.b16 %v2644, %v2642
    %v2759 = vpack.c.b16 %v2645, %v2643
    %v2760 = vpack.c.b16 %v2648, %v2646
    %v2761 = vpack.c.b16 %v2649, %v2647
    %v2762 = vpack.c.b16 %v2652, %v2650
    %v2763 = vpack.c.b16 %v2653, %v2651
    %v2764 = vpack.c.b16 %v2656, %v2654
    %v2765 = vpack.c.b16 %v2657, %v2655
    %v2766 = vpack.c.b16 %v2660, %v2658
    %v2767 = vpack.c.b16 %v2661, %v2659
    %v2768 = vpack.c.b16 %v2664, %v2662
    %v2769 = vpack.c.b16 %v2665, %v2663
    %v2770 = vpack.c.b16 %v2668, %v2666
    %v2771 = vpack.c.b16 %v2669, %v2667
    %v2772 = vpack.c.b16 %v2672, %v2670
    %v2773 = vpack.c.b16 %v2673, %v2671
    %v2774 = vpack.c.b16 %v2676, %v2674
    %v2775 = vpack.c.b16 %v2677, %v2675
    %v2776 = vpack.c.b16 %v2680, %v2678
    %v2777 = vpack.c.b16 %v2681, %v2679
    %v2778 = vpack.c.b16 %v2684, %v2682
    %v2779 = vpack.c.b16 %v2685, %v2683
    %v2780 = vpack.c.b16 %v2688, %v2686
    %v2781 = vpack.c.b16 %v2689, %v2687
    %v2782 = vpack.c.b16 %v2692, %v2690
    %v2783 = vpack.c.b16 %v2693, %v2691
    %v2784 = vpack.c.b16 %v2696, %v2694
    %v2785 = vpack.c.b16 %v2697, %v2695
    %v2786 = vpack.c.b16 %v2700, %v2698
    %v2787 = vpack.c.b16 %v2701, %v2699
    %v2788 = vpack.c.b16 %v2704, %v2702
    %v2789 = vpack.c.b16 %v2705, %v2703
    %v2790 = vpack.c.b16 %v2708, %v2706
    %v2791 = vpack.c.b16 %v2709, %v2707
    %v2792 = vpack.c.b16 %v2712, %v2710
    %v2793 = vpack.c.b16 %v2713, %v2711
    %v2794 = vpack.c.b16 %v2716, %v2714
    %v2795 = vpack.c.b16 %v2717, %v2715
    %v2796 = vpack.c.b16 %v2720, %v2718
    %v2797 = vpack.c.b16 %v2721, %v2719
    %v2798 = vpack.c.b16 %v2724, %v2722
    %v2799 = vpack.c.b16 %v2725, %v2723
    %v2800 = vpack.c.b16 %v2728, %v2726
    %v2801 = vpack.c.b16 %v2729, %v2727
    %v2802 = vpack.c.b16 %v2732, %v2730
    %v2803 = vpack.c.b16 %v2733, %v2731
    %v2804 = vpack.c.b16 %v2736, %v2734
    %v2805 = vpack.c.b16 %v2737, %v2735
    %v2806 = vpack.c.b16 %v2740, %v2738
    %v2807 = vpack.c.b16 %v2741, %v2739
    %v2808 = vpack.c.b16 %v2744, %v2742
    %v2809 = vpack.c.b16 %v2745, %v2743
    %2874 = vmatprep.subr.bf16.mxu0 %v2761
    %2875 = vmatpush1.bf16.msra.mxu0 %v2760
    %2876 = vmatprep.subr.bf16.mxu0 %v2759
    %2877 = vmatpush1.bf16.msra.mxu0 %v2758
    %2878 = vmatprep.subr.bf16.mxu0 %v2757
    %2879 = vmatpush1.bf16.msra.mxu0 %v2756
    %2880 = vmatprep.subr.bf16.mxu0 %v2755
    %2881 = vmatpush1.bf16.msra.mxu0 %v2754
    %2882 = vmatprep.subr.bf16.mxu0 %v2753
    %2883 = vmatpush1.bf16.msra.mxu0 %v2752
    %2884 = vmatprep.subr.bf16.mxu0 %v2751
    %2885 = vmatpush1.bf16.msra.mxu0 %v2750
    %2886 = vmatprep.subr.bf16.mxu0 %v2749
    %2887 = vmatpush1.bf16.msra.mxu0 %v2748
    %2888 = vmatprep.subr.bf16.mxu0 %v2747
    %2889 = vmatpush1.bf16.msra.mxu0 %v2746
    %2890 = vmatprep.subr.bf16.mxu0 %v2777
    %2891 = vmatpush2.bf16.msra.mxu0 %v2776
    %2892 = vmatprep.subr.bf16.mxu0 %v2775
    %2893 = vmatpush2.bf16.msra.mxu0 %v2774
    %2894 = vmatprep.subr.bf16.mxu0 %v2773
    %2895 = vmatpush2.bf16.msra.mxu0 %v2772
    %2896 = vmatprep.subr.bf16.mxu0 %v2771
    %2897 = vmatpush2.bf16.msra.mxu0 %v2770
    %2898 = vmatprep.subr.bf16.mxu0 %v2769
    %2899 = vmatpush2.bf16.msra.mxu0 %v2768
    %2900 = vmatprep.subr.bf16.mxu0 %v2767
    %2901 = vmatpush2.bf16.msra.mxu0 %v2766
    %2902 = vmatprep.subr.bf16.mxu0 %v2765
    %2903 = vmatpush2.bf16.msra.mxu0 %v2764
    %2904 = vmatprep.subr.bf16.mxu0 %v2763
    %2905 = vmatpush2.bf16.msra.mxu0 %v2762
    %2906 = vmatprep.mubr.bf16.mxu0 %v89
    %2907 = vmatmul.mubr.bf16.gmra.mxu0 %v88
    %v2908 = vpop.f32.mrf.mxu0
    %v2909 = vadd.f32 0.0, %v2908
    %v2910 = vpop.f32.mrf.mxu0
    %v2911 = vadd.f32 0.0, %v2910
    %v2912 = vpop.f32.mrf.mxu0
    %v2913 = vpop.f32.mrf.mxu0
    %2914 = vdwg.mxu0
    %2915 = vmatprep.subr.bf16.mxu0 %v2793
    %2916 = vmatpush1.bf16.msra.mxu0 %v2792
    %2917 = vmatprep.subr.bf16.mxu0 %v2791
    %2918 = vmatpush1.bf16.msra.mxu0 %v2790
    %2919 = vmatprep.subr.bf16.mxu0 %v2789
    %2920 = vmatpush1.bf16.msra.mxu0 %v2788
    %2921 = vmatprep.subr.bf16.mxu0 %v2787
    %2922 = vmatpush1.bf16.msra.mxu0 %v2786
    %2923 = vmatprep.subr.bf16.mxu0 %v2785
    %2924 = vmatpush1.bf16.msra.mxu0 %v2784
    %2925 = vmatprep.subr.bf16.mxu0 %v2783
    %2926 = vmatpush1.bf16.msra.mxu0 %v2782
    %2927 = vmatprep.subr.bf16.mxu0 %v2781
    %2928 = vmatpush1.bf16.msra.mxu0 %v2780
    %2929 = vmatprep.subr.bf16.mxu0 %v2779
    %2930 = vmatpush1.bf16.msra.mxu0 %v2778
    %2931 = vmatprep.subr.bf16.mxu0 %v2809
    %2932 = vmatpush2.bf16.msra.mxu0 %v2808
    %2933 = vmatprep.subr.bf16.mxu0 %v2807
    %2934 = vmatpush2.bf16.msra.mxu0 %v2806
    %2935 = vmatprep.subr.bf16.mxu0 %v2805
    %2936 = vmatpush2.bf16.msra.mxu0 %v2804
    %2937 = vmatprep.subr.bf16.mxu0 %v2803
    %2938 = vmatpush2.bf16.msra.mxu0 %v2802
    %2939 = vmatprep.subr.bf16.mxu0 %v2801
    %2940 = vmatpush2.bf16.msra.mxu0 %v2800
    %2941 = vmatprep.subr.bf16.mxu0 %v2799
    %2942 = vmatpush2.bf16.msra.mxu0 %v2798
    %2943 = vmatprep.subr.bf16.mxu0 %v2797
    %2944 = vmatpush2.bf16.msra.mxu0 %v2796
    %2945 = vmatprep.subr.bf16.mxu0 %v2795
    %2946 = vmatpush2.bf16.msra.mxu0 %v2794
    %2947 = vmatprep.mubr.bf16.mxu0 %v91
    %2948 = vmatmul.mubr.bf16.gmra.mxu0 %v90
    %v2949 = vpop.f32.mrf.mxu0
    %v2950 = vadd.f32 %v2909, %v2949
    %v2951 = vpop.f32.mrf.mxu0
    %v2952 = vadd.f32 %v2911, %v2951
    %v2953 = vpop.f32.mrf.mxu0
    %v2954 = vpop.f32.mrf.mxu0
    %2955 = vdwg.mxu0
    %v3020 = vunpack.c.l.b16 %v480
    %v3021 = vunpack.c.h.b16 %v480
    %v3022 = vunpack.c.l.b16 %v481
    %v3023 = vunpack.c.h.b16 %v481
    %v3024 = vunpack.c.l.b16 %v482
    %v3025 = vunpack.c.h.b16 %v482
    %v3026 = vunpack.c.l.b16 %v483
    %v3027 = vunpack.c.h.b16 %v483
    %v3028 = vunpack.c.l.b16 %v484
    %v3029 = vunpack.c.h.b16 %v484
    %v3030 = vunpack.c.l.b16 %v485
    %v3031 = vunpack.c.h.b16 %v485
    %v3032 = vunpack.c.l.b16 %v486
    %v3033 = vunpack.c.h.b16 %v486
    %v3034 = vunpack.c.l.b16 %v487
    %v3035 = vunpack.c.h.b16 %v487
    %v3036 = vunpack.c.l.b16 %v488
    %v3037 = vunpack.c.h.b16 %v488
    %v3038 = vunpack.c.l.b16 %v489
    %v3039 = vunpack.c.h.b16 %v489
    %v3040 = vunpack.c.l.b16 %v490
    %v3041 = vunpack.c.h.b16 %v490
    %v3042 = vunpack.c.l.b16 %v491
    %v3043 = vunpack.c.h.b16 %v491
    %v3044 = vunpack.c.l.b16 %v492
    %v3045 = vunpack.c.h.b16 %v492
    %v3046 = vunpack.c.l.b16 %v493
    %v3047 = vunpack.c.h.b16 %v493
    %v3048 = vunpack.c.l.b16 %v494
    %v3049 = vunpack.c.h.b16 %v494
    %v3050 = vunpack.c.l.b16 %v495
    %v3051 = vunpack.c.h.b16 %v495
    %v3052 = vunpack.c.l.b16 %v496
    %v3053 = vunpack.c.h.b16 %v496
    %v3054 = vunpack.c.l.b16 %v497
    %v3055 = vunpack.c.h.b16 %v497
    %v3056 = vunpack.c.l.b16 %v498
    %v3057 = vunpack.c.h.b16 %v498
    %v3058 = vunpack.c.l.b16 %v499
    %v3059 = vunpack.c.h.b16 %v499
    %v3060 = vunpack.c.l.b16 %v500
    %v3061 = vunpack.c.h.b16 %v500
    %v3062 = vunpack.c.l.b16 %v501
    %v3063 = vunpack.c.h.b16 %v501
    %v3064 = vunpack.c.l.b16 %v502
    %v3065 = vunpack.c.h.b16 %v502
    %v3066 = vunpack.c.l.b16 %v503
    %v3067 = vunpack.c.h.b16 %v503
    %v3068 = vunpack.c.l.b16 %v504
    %v3069 = vunpack.c.h.b16 %v504
    %v3070 = vunpack.c.l.b16 %v505
    %v3071 = vunpack.c.h.b16 %v505
    %v3072 = vunpack.c.l.b16 %v506
    %v3073 = vunpack.c.h.b16 %v506
    %v3074 = vunpack.c.l.b16 %v507
    %v3075 = vunpack.c.h.b16 %v507
    %v3076 = vunpack.c.l.b16 %v508
    %v3077 = vunpack.c.h.b16 %v508
    %v3078 = vunpack.c.l.b16 %v509
    %v3079 = vunpack.c.h.b16 %v509
    %v3080 = vunpack.c.l.b16 %v510
    %v3081 = vunpack.c.h.b16 %v510
    %v3082 = vunpack.c.l.b16 %v511
    %v3083 = vunpack.c.h.b16 %v511
    %v3084 = vunpack.c.l.b16 %v512
    %v3085 = vunpack.c.h.b16 %v512
    %v3086 = vunpack.c.l.b16 %v513
    %v3087 = vunpack.c.h.b16 %v513
    %v3088 = vunpack.c.l.b16 %v514
    %v3089 = vunpack.c.h.b16 %v514
    %v3090 = vunpack.c.l.b16 %v515
    %v3091 = vunpack.c.h.b16 %v515
    %v3092 = vunpack.c.l.b16 %v516
    %v3093 = vunpack.c.h.b16 %v516
    %v3094 = vunpack.c.l.b16 %v517
    %v3095 = vunpack.c.h.b16 %v517
    %v3096 = vunpack.c.l.b16 %v518
    %v3097 = vunpack.c.h.b16 %v518
    %v3098 = vunpack.c.l.b16 %v519
    %v3099 = vunpack.c.h.b16 %v519
    %v3100 = vunpack.c.l.b16 %v520
    %v3101 = vunpack.c.h.b16 %v520
    %v3102 = vunpack.c.l.b16 %v521
    %v3103 = vunpack.c.h.b16 %v521
    %v3104 = vunpack.c.l.b16 %v522
    %v3105 = vunpack.c.h.b16 %v522
    %v3106 = vunpack.c.l.b16 %v523
    %v3107 = vunpack.c.h.b16 %v523
    %v3108 = vunpack.c.l.b16 %v524
    %v3109 = vunpack.c.h.b16 %v524
    %v3110 = vunpack.c.l.b16 %v525
    %v3111 = vunpack.c.h.b16 %v525
    %v3112 = vunpack.c.l.b16 %v526
    %v3113 = vunpack.c.h.b16 %v526
    %v3114 = vunpack.c.l.b16 %v527
    %v3115 = vunpack.c.h.b16 %v527
    %v3116 = vunpack.c.l.b16 %v528
    %v3117 = vunpack.c.h.b16 %v528
    %v3118 = vunpack.c.l.b16 %v529
    %v3119 = vunpack.c.h.b16 %v529
    %v3120 = vunpack.c.l.b16 %v530
    %v3121 = vunpack.c.h.b16 %v530
    %v3122 = vunpack.c.l.b16 %v531
    %v3123 = vunpack.c.h.b16 %v531
    %v3124 = vunpack.c.l.b16 %v532
    %v3125 = vunpack.c.h.b16 %v532
    %v3126 = vunpack.c.l.b16 %v533
    %v3127 = vunpack.c.h.b16 %v533
    %v3128 = vunpack.c.l.b16 %v534
    %v3129 = vunpack.c.h.b16 %v534
    %v3130 = vunpack.c.l.b16 %v535
    %v3131 = vunpack.c.h.b16 %v535
    %v3132 = vunpack.c.l.b16 %v536
    %v3133 = vunpack.c.h.b16 %v536
    %v3134 = vunpack.c.l.b16 %v537
    %v3135 = vunpack.c.h.b16 %v537
    %v3136 = vunpack.c.l.b16 %v538
    %v3137 = vunpack.c.h.b16 %v538
    %v3138 = vunpack.c.l.b16 %v539
    %v3139 = vunpack.c.h.b16 %v539
    %v3140 = vunpack.c.l.b16 %v540
    %v3141 = vunpack.c.h.b16 %v540
    %v3142 = vunpack.c.l.b16 %v541
    %v3143 = vunpack.c.h.b16 %v541
    %v3144 = vunpack.c.l.b16 %v542
    %v3145 = vunpack.c.h.b16 %v542
    %v3146 = vunpack.c.l.b16 %v543
    %v3147 = vunpack.c.h.b16 %v543
    %v3148 = vpack.c.b16 %v3022, %v3020
    %v3149 = vpack.c.b16 %v3023, %v3021
    %v3150 = vpack.c.b16 %v3026, %v3024
    %v3151 = vpack.c.b16 %v3027, %v3025
    %v3152 = vpack.c.b16 %v3030, %v3028
    %v3153 = vpack.c.b16 %v3031, %v3029
    %v3154 = vpack.c.b16 %v3034, %v3032
    %v3155 = vpack.c.b16 %v3035, %v3033
    %v3156 = vpack.c.b16 %v3038, %v3036
    %v3157 = vpack.c.b16 %v3039, %v3037
    %v3158 = vpack.c.b16 %v3042, %v3040
    %v3159 = vpack.c.b16 %v3043, %v3041
    %v3160 = vpack.c.b16 %v3046, %v3044
    %v3161 = vpack.c.b16 %v3047, %v3045
    %v3162 = vpack.c.b16 %v3050, %v3048
    %v3163 = vpack.c.b16 %v3051, %v3049
    %v3164 = vpack.c.b16 %v3054, %v3052
    %v3165 = vpack.c.b16 %v3055, %v3053
    %v3166 = vpack.c.b16 %v3058, %v3056
    %v3167 = vpack.c.b16 %v3059, %v3057
    %v3168 = vpack.c.b16 %v3062, %v3060
    %v3169 = vpack.c.b16 %v3063, %v3061
    %v3170 = vpack.c.b16 %v3066, %v3064
    %v3171 = vpack.c.b16 %v3067, %v3065
    %v3172 = vpack.c.b16 %v3070, %v3068
    %v3173 = vpack.c.b16 %v3071, %v3069
    %v3174 = vpack.c.b16 %v3074, %v3072
    %v3175 = vpack.c.b16 %v3075, %v3073
    %v3176 = vpack.c.b16 %v3078, %v3076
    %v3177 = vpack.c.b16 %v3079, %v3077
    %v3178 = vpack.c.b16 %v3082, %v3080
    %v3179 = vpack.c.b16 %v3083, %v3081
    %v3180 = vpack.c.b16 %v3086, %v3084
    %v3181 = vpack.c.b16 %v3087, %v3085
    %v3182 = vpack.c.b16 %v3090, %v3088
    %v3183 = vpack.c.b16 %v3091, %v3089
    %v3184 = vpack.c.b16 %v3094, %v3092
    %v3185 = vpack.c.b16 %v3095, %v3093
    %v3186 = vpack.c.b16 %v3098, %v3096
    %v3187 = vpack.c.b16 %v3099, %v3097
    %v3188 = vpack.c.b16 %v3102, %v3100
    %v3189 = vpack.c.b16 %v3103, %v3101
    %v3190 = vpack.c.b16 %v3106, %v3104
    %v3191 = vpack.c.b16 %v3107, %v3105
    %v3192 = vpack.c.b16 %v3110, %v3108
    %v3193 = vpack.c.b16 %v3111, %v3109
    %v3194 = vpack.c.b16 %v3114, %v3112
    %v3195 = vpack.c.b16 %v3115, %v3113
    %v3196 = vpack.c.b16 %v3118, %v3116
    %v3197 = vpack.c.b16 %v3119, %v3117
    %v3198 = vpack.c.b16 %v3122, %v3120
    %v3199 = vpack.c.b16 %v3123, %v3121
    %v3200 = vpack.c.b16 %v3126, %v3124
    %v3201 = vpack.c.b16 %v3127, %v3125
    %v3202 = vpack.c.b16 %v3130, %v3128
    %v3203 = vpack.c.b16 %v3131, %v3129
    %v3204 = vpack.c.b16 %v3134, %v3132
    %v3205 = vpack.c.b16 %v3135, %v3133
    %v3206 = vpack.c.b16 %v3138, %v3136
    %v3207 = vpack.c.b16 %v3139, %v3137
    %v3208 = vpack.c.b16 %v3142, %v3140
    %v3209 = vpack.c.b16 %v3143, %v3141
    %v3210 = vpack.c.b16 %v3146, %v3144
    %v3211 = vpack.c.b16 %v3147, %v3145
    %3276 = vmatprep.subr.bf16.mxu0 %v3163
    %3277 = vmatpush1.bf16.msra.mxu0 %v3162
    %3278 = vmatprep.subr.bf16.mxu0 %v3161
    %3279 = vmatpush1.bf16.msra.mxu0 %v3160
    %3280 = vmatprep.subr.bf16.mxu0 %v3159
    %3281 = vmatpush1.bf16.msra.mxu0 %v3158
    %3282 = vmatprep.subr.bf16.mxu0 %v3157
    %3283 = vmatpush1.bf16.msra.mxu0 %v3156
    %3284 = vmatprep.subr.bf16.mxu0 %v3155
    %3285 = vmatpush1.bf16.msra.mxu0 %v3154
    %3286 = vmatprep.subr.bf16.mxu0 %v3153
    %3287 = vmatpush1.bf16.msra.mxu0 %v3152
    %3288 = vmatprep.subr.bf16.mxu0 %v3151
    %3289 = vmatpush1.bf16.msra.mxu0 %v3150
    %3290 = vmatprep.subr.bf16.mxu0 %v3149
    %3291 = vmatpush1.bf16.msra.mxu0 %v3148
    %3292 = vmatprep.subr.bf16.mxu0 %v3179
    %3293 = vmatpush2.bf16.msra.mxu0 %v3178
    %3294 = vmatprep.subr.bf16.mxu0 %v3177
    %3295 = vmatpush2.bf16.msra.mxu0 %v3176
    %3296 = vmatprep.subr.bf16.mxu0 %v3175
    %3297 = vmatpush2.bf16.msra.mxu0 %v3174
    %3298 = vmatprep.subr.bf16.mxu0 %v3173
    %3299 = vmatpush2.bf16.msra.mxu0 %v3172
    %3300 = vmatprep.subr.bf16.mxu0 %v3171
    %3301 = vmatpush2.bf16.msra.mxu0 %v3170
    %3302 = vmatprep.subr.bf16.mxu0 %v3169
    %3303 = vmatpush2.bf16.msra.mxu0 %v3168
    %3304 = vmatprep.subr.bf16.mxu0 %v3167
    %3305 = vmatpush2.bf16.msra.mxu0 %v3166
    %3306 = vmatprep.subr.bf16.mxu0 %v3165
    %3307 = vmatpush2.bf16.msra.mxu0 %v3164
    %3308 = vmatprep.mubr.bf16.mxu0 %v93
    %3309 = vmatmul.mubr.bf16.gmra.mxu0 %v92
    %v3310 = vpop.f32.mrf.mxu0
    %v3311 = vadd.f32 0.0, %v3310
    %v3312 = vpop.f32.mrf.mxu0
    %v3313 = vadd.f32 0.0, %v3312
    %v3314 = vpop.f32.mrf.mxu0
    %v3315 = vpop.f32.mrf.mxu0
    %3316 = vdwg.mxu0
    %3317 = vmatprep.subr.bf16.mxu0 %v3195
    %3318 = vmatpush1.bf16.msra.mxu0 %v3194
    %3319 = vmatprep.subr.bf16.mxu0 %v3193
    %3320 = vmatpush1.bf16.msra.mxu0 %v3192
    %3321 = vmatprep.subr.bf16.mxu0 %v3191
    %3322 = vmatpush1.bf16.msra.mxu0 %v3190
    %3323 = vmatprep.subr.bf16.mxu0 %v3189
    %3324 = vmatpush1.bf16.msra.mxu0 %v3188
    %3325 = vmatprep.subr.bf16.mxu0 %v3187
    %3326 = vmatpush1.bf16.msra.mxu0 %v3186
    %3327 = vmatprep.subr.bf16.mxu0 %v3185
    %3328 = vmatpush1.bf16.msra.mxu0 %v3184
    %3329 = vmatprep.subr.bf16.mxu0 %v3183
    %3330 = vmatpush1.bf16.msra.mxu0 %v3182
    %3331 = vmatprep.subr.bf16.mxu0 %v3181
    %3332 = vmatpush1.bf16.msra.mxu0 %v3180
    %3333 = vmatprep.subr.bf16.mxu0 %v3211
    %3334 = vmatpush2.bf16.msra.mxu0 %v3210
    %3335 = vmatprep.subr.bf16.mxu0 %v3209
    %3336 = vmatpush2.bf16.msra.mxu0 %v3208
    %3337 = vmatprep.subr.bf16.mxu0 %v3207
    %3338 = vmatpush2.bf16.msra.mxu0 %v3206
    %3339 = vmatprep.subr.bf16.mxu0 %v3205
    %3340 = vmatpush2.bf16.msra.mxu0 %v3204
    %3341 = vmatprep.subr.bf16.mxu0 %v3203
    %3342 = vmatpush2.bf16.msra.mxu0 %v3202
    %3343 = vmatprep.subr.bf16.mxu0 %v3201
    %3344 = vmatpush2.bf16.msra.mxu0 %v3200
    %3345 = vmatprep.subr.bf16.mxu0 %v3199
    %3346 = vmatpush2.bf16.msra.mxu0 %v3198
    %3347 = vmatprep.subr.bf16.mxu0 %v3197
    %3348 = vmatpush2.bf16.msra.mxu0 %v3196
    %3349 = vmatprep.mubr.bf16.mxu0 %v95
    %3350 = vmatmul.mubr.bf16.gmra.mxu0 %v94
    %v3351 = vpop.f32.mrf.mxu0
    %v3352 = vadd.f32 %v3311, %v3351
    %v3353 = vpop.f32.mrf.mxu0
    %v3354 = vadd.f32 %v3313, %v3353
    %v3355 = vpop.f32.mrf.mxu0
    %v3356 = vpop.f32.mrf.mxu0
    %3357 = vdwg.mxu0
    %v3358 = vmax.f32 %v940, 0.0
    %v3359 = vmax.f32 %v942, 0.0
    %v3360 = vmax.f32 %v1342, 0.0
    %v3361 = vmax.f32 %v1344, 0.0
    %v3362 = vmax.f32 %v1744, 0.0
    %v3363 = vmax.f32 %v1746, 0.0
    %v3364 = vmax.f32 %v2146, 0.0
    %v3365 = vmax.f32 %v2148, 0.0
    %v3366 = vmax.f32 %v2548, 0.0
    %v3367 = vmax.f32 %v2550, 0.0
    %v3368 = vmax.f32 %v2950, 0.0
    %v3369 = vmax.f32 %v2952, 0.0
    %v3370 = vmax.f32 %v3352, 0.0
    %v3371 = vmax.f32 %v3354, 0.0
    %3372 = vst [vmem:[#allocation7] sm:$0xff] %v3358
    %3373 = vst [vmem:[#allocation7 + $0x8] sm:$0xff] %v3359
    %3374 = vst [vmem:[#allocation7 + $0x10] sm:$0xff] %v3360
    %3375 = vst [vmem:[#allocation7 + $0x18] sm:$0xff] %v3361
    %3376 = vst [vmem:[#allocation7 + $0x20] sm:$0xff] %v3362
    %3377 = vst [vmem:[#allocation7 + $0x28] sm:$0xff] %v3363
    %3378 = vst [vmem:[#allocation7 + $0x30] sm:$0xff] %v3364
    %3379 = vst [vmem:[#allocation7 + $0x38] sm:$0xff] %v3365
    %3380 = vst [vmem:[#allocation7 + $0x40] sm:$0xff] %v3366
    %3381 = vst [vmem:[#allocation7 + $0x48] sm:$0xff] %v3367
    %3382 = vst [vmem:[#allocation7 + $0x50] sm:$0xff] %v3368
    %3383 = vst [vmem:[#allocation7 + $0x58] sm:$0xff] %v3369
    %3384 = vst [vmem:[#allocation7 + $0x60] sm:$0xff] %v3370
    %3385 = vst [vmem:[#allocation7 + $0x68] sm:$0xff] %v3371
    // Predicated region
    $region18: #{lmbn_p_fc_forward_stacked.1} parent=1 // pred_check
      _
    $region19: #{lmbn_p_fc_forward_stacked.1} parent=1 // pred_check_branch
      %3387 = sbr.rel (0) target = $region21
    $region20: #{lmbn_p_fc_forward_stacked.1} parent=1 // pred_region
      %s3389 = ssub.s32 1792, 1792
      %3390 = vsyncadd [#allocation4], %s3389
      %s3391 = sshll.u32 [#allocation7], 4
      %s3392 = int_to_ptr.vmem [resolvable:$true] %s3391
      %3397 = dma.vmem_to_hbm [thread:$0]  %s3392, 1792, %s2, [#allocation4], 256, 256, 16
    $region21: #{lmbn_p_fc_forward_stacked.1} parent=1 // pred_fallthru
      _
    // Predicated region
    $region22: #{lmbn_p_fc_forward_stacked.1} parent=1 // pred_check
      _
    $region23: #{lmbn_p_fc_forward_stacked.1} parent=1 // pred_check_branch
      %3399 = sbr.rel (0) target = $region25
    $region24: #{lmbn_p_fc_forward_stacked.1} parent=1 // pred_region
      %3400 = dma.done [#allocation4], 1792
    $region25: #{lmbn_p_fc_forward_stacked.1} parent=1 // pred_fallthru
      _
    %3401 = vsyncpa [#allocation3], 1
    %3402 = vsyncpa [#allocation6], 1
    %3403 = vsyncpa [#allocation4], 1

</llo_original>
